<compile_context>
chip_gen: v5e
topology: v5e:2x2
jax: 0.10.0
libtpu: 0.0.40
codegen_flags: <defaults>
</compile_context>

<pallas_src>
import functools

import jax
import jax.numpy as jnp
from jax.experimental import pallas as pl
from jax.experimental.pallas import tpu as pltpu


# ----------------------------------------------------------------------------
# helpers
# ----------------------------------------------------------------------------
def autopad(k, p=None, d=1):
    if d > 1:
        k = d * (k - 1) + 1
    if p is None:
        p = k // 2
    return p


def _round_up(x, m):
    return (x + m - 1) // m * m


def _vmem_block_bytes(shape, dtype_bytes):
    """Rough VMEM footprint of one block (last two dims padded to (8, 128))."""
    if len(shape) == 1:
        return _round_up(shape[0] * dtype_bytes, 512)
    lead = 1
    for s in shape[:-2]:
        lead *= s
    return lead * _round_up(shape[-2], 8) * _round_up(shape[-1], 128) * dtype_bytes


def _vmem_capacity_bytes():
    """Physical VMEM of the attached TPU (fallback: assume a 64 MiB part)."""
    try:
        cap = getattr(pltpu.get_tpu_info(), "vmem_capacity_bytes", None)
        if cap:
            return int(cap)
    except Exception:
        pass
    return 64 << 20


def _tile_bytes(th, Wp, Wo, C1, C2p, k, s, d):
    """Approximate VMEM working set for a row tile of th output rows."""
    Hb = (th - 1) * s + d * (k - 1) + 1
    return (2 * _vmem_block_bytes((1, Hb, Wp, C1), 2)        # x block (bf16, 2 bufs)
            + 2 * _vmem_block_bytes((1, th, Wo, C2p), 4)     # out block (2 bufs)
            + 1 * _vmem_block_bytes((th * Wo, C2p), 4)       # f32 accumulator scratch
            + 2 * _vmem_block_bytes((th * Wo, k * C1), 2)    # folded-K lhs temporaries
            + 2 * _vmem_block_bytes((k, k * C1, C2p), 2)     # weights (2 bufs)
            + 2 * _vmem_block_bytes((1, C2p), 4)             # bias
            + (2 << 20))                                     # slack


def _pick_tile_rows(Ho, Wp, Wo, C1, C2p, k, s, d, budget):
    """Largest row tile whose working set fits `budget`; Ho need NOT divide."""
    th_max = 1
    for th in range(1, Ho + 1):
        if _tile_bytes(th, Wp, Wo, C1, C2p, k, s, d) <= budget:
            th_max = th
        else:
            break                       # monotonic in th
    n_hb = -(-Ho // th_max)
    th = -(-Ho // n_hb)                 # rebalance: total waste <= n_hb - 1 rows
    return th, n_hb


# ----------------------------------------------------------------------------
# Pallas kernel: direct conv (kw folded into K) + BN bias + SiLU
# ----------------------------------------------------------------------------
def _conv_bn_silu_kernel(x_ref, w_ref, b_ref, o_ref, acc_ref, *,
                         k, s, d, th, Wo, apply_act):
    # x_ref:   (1, Hb, Wp, C1)   bf16 padded-input row block (halo included)
    # w_ref:   (k, k*C1, C2p)    bf16 conv weight with BN scale folded in
    # b_ref:   (1, C2p)          f32 folded BN bias
    # o_ref:   (1, th, Wo, C2p)  f32 output tile
    # acc_ref: (th*Wo, C2p)      f32 accumulator scratch
    x = x_ref[0]                                   # (Hb, Wp, C1)
    c1 = x.shape[-1]
    c2p = o_ref.shape[-1]

    for kh in range(k):                            # static, fully unrolled: k matmuls
        band = x[kh * d: kh * d + (th - 1) * s + 1: s, :, :]           # (th, *, C1)
        wins = [band[:, kw * d: kw * d + (Wo - 1) * s + 1: s, :]       # (th, Wo, C1)
                for kw in range(k)]
        # kw taps folded into the contraction -> one MXU call with K = k*C1.
        lhs = wins[0] if k == 1 else jnp.concatenate(wins, axis=-1)    # (th, Wo, k*C1)
        contrib = jnp.dot(lhs.reshape(th * Wo, k * c1), w_ref[kh],
                          preferred_element_type=jnp.float32)
        if kh == 0:
            acc_ref[...] = contrib
        else:
            acc_ref[...] += contrib

    y = acc_ref[...] + b_ref[...]                  # BN scale already in the weights
    if apply_act:
        # SiLU = y * sigmoid(y); sigmoid via a single EUP tanh: 0.5*(1+tanh(y/2)).
        y = y * (0.5 * (jnp.tanh(0.5 * y) + 1.0))
    o_ref[0] = y.reshape(th, Wo, c2p).astype(o_ref.dtype)


# ----------------------------------------------------------------------------
# Functional Conv module: conv2d (no bias) -> BatchNorm2d (eval) -> SiLU
# ----------------------------------------------------------------------------
def conv_forward_nhwc(x_nhwc, params, *, k=3, s=1, p=None, d=1, act=True):
    """x: [N, H, W, C1] float32 -> [N, Ho, Wo, C2] float32 (preferred entry)."""
    pad = autopad(k, p, d)
    w = params["conv_w"]                 # (C2, C1, kh, kw)
    gamma = params["bn_gamma"].astype(jnp.float32)
    beta = params["bn_beta"].astype(jnp.float32)
    mean = params["bn_mean"].astype(jnp.float32)
    var = params["bn_var"].astype(jnp.float32)
    eps = 1e-5

    N, H, W, C1 = x_nhwc.shape
    C2 = w.shape[0]
    keff = d * (k - 1) + 1
    Ho = (H + 2 * pad - keff) // s + 1
    Wo = (W + 2 * pad - keff) // s + 1
    Wp = W + 2 * pad
    C2p = _round_up(C2, 128)             # lane-dense output channels

    # Generation-aware VMEM budgeting.
    cap = _vmem_capacity_bytes()
    limit_cap = min(cap - (16 << 20), (cap * 3) // 4)   # ~48 MiB (v7x) / ~96 MiB (v5e/v6e)
    budget = (limit_cap * 7) // 10
    th, n_hb = _pick_tile_rows(Ho, Wp, Wo, C1, C2p, k, s, d, budget)
    Ho_pad = n_hb * th
    Hb = (th - 1) * s + keff

    # Pad + cast input once (extra bottom rows cover the padded last row tile).
    extra_h = max(0, (Ho_pad - 1) * s + keff - (H + 2 * pad))
    x_p = jnp.pad(x_nhwc.astype(jnp.bfloat16),
                  ((0, 0), (pad, pad + extra_h), (pad, pad), (0, 0)))

    # Fold BatchNorm: scale into the weights (f32, pre-cast); bias stays separate.
    inv_std = jax.lax.rsqrt(var + eps)
    scale = gamma * inv_std                                      # (C2,)
    bias = beta - mean * scale                                   # (C2,)
    w2 = jnp.transpose(w.astype(jnp.float32), (2, 3, 1, 0))      # (kh, kw, C1, C2)
    w2 = (w2 * scale[None, None, None, :]).reshape(k, k * C1, C2)
    w2 = jnp.pad(w2, ((0, 0), (0, 0), (0, C2p - C2))).astype(jnp.bfloat16)
    bias_p = jnp.pad(bias, (0, C2p - C2)).reshape(1, C2p).astype(jnp.float32)

    if n_hb == 1:
        x_spec = pl.BlockSpec((1, Hb, Wp, C1), lambda n, hb: (n, 0, 0, 0))
    else:
        # Overlapping (halo'd) row windows: element-offset indexing on H.
        row_step = th * s
        x_spec = pl.BlockSpec((1, pl.Element(Hb), Wp, C1),
                              lambda n, hb: (n, hb * row_step, 0, 0))

    vmem_need = _tile_bytes(th, Wp, Wo, C1, C2p, k, s, d)
    vmem_limit = int(min(max(vmem_need * 3 // 2, 32 << 20), limit_cap))

    cost = pl.CostEstimate(
        flops=int(2 * N * Ho_pad * Wo * (k * k * C1) * C2p),
        transcendentals=int(N * Ho_pad * Wo * C2p) if act else 0,
        bytes_accessed=int(x_p.size * 2 + w2.size * 2 + bias_p.size * 4
                           + N * Ho_pad * Wo * C2p * 4),
    )

    kernel = functools.partial(_conv_bn_silu_kernel, k=k, s=s, d=d, th=th,
                               Wo=Wo, apply_act=bool(act))

    out = pl.pallas_call(
        kernel,
        out_shape=jax.ShapeDtypeStruct((N, Ho_pad, Wo, C2p), jnp.float32),
        grid_spec=pltpu.PrefetchScalarGridSpec(
            num_scalar_prefetch=0,
            grid=(N, n_hb),
            in_specs=[
                x_spec,
                pl.BlockSpec((k, k * C1, C2p), lambda n, hb: (0, 0, 0)),
                pl.BlockSpec((1, C2p), lambda n, hb: (0, 0)),
            ],
            out_specs=pl.BlockSpec((1, th, Wo, C2p), lambda n, hb: (n, hb, 0, 0)),
            scratch_shapes=[pltpu.VMEM((th * Wo, C2p), jnp.float32)],
        ),
        compiler_params=pltpu.CompilerParams(
            dimension_semantics=("parallel", "parallel"),
            vmem_limit_bytes=vmem_limit,
        ),
        cost_estimate=cost,
    )(x_p, w2, bias_p)

    if Ho_pad != Ho or C2p != C2:
        out = out[:, :Ho, :, :C2]
    return out


def conv_forward(x_nchw, params, *, k=3, s=1, p=None, d=1, act=True):
    """PyTorch-layout entry point: [N, C1, H, W] -> [N, C2, Ho, Wo].

    Prefer conv_forward_nhwc inside an NHWC pipeline: it skips the two layout
    transposes (each is an extra HBM pass outside the kernel).
    """
    x = jnp.transpose(x_nchw, (0, 2, 3, 1))
    y = conv_forward_nhwc(x, params, k=k, s=s, p=p, d=d, act=act)
    return jnp.transpose(y, (0, 3, 1, 2))


# ----------------------------------------------------------------------------
# Reference (pure JAX, f32) for verification
# ----------------------------------------------------------------------------
def conv_forward_ref(x_nchw, params, *, k=3, s=1, p=None, d=1, act=True):
    pad = autopad(k, p, d)
    w = params["conv_w"]
    gamma, beta = params["bn_gamma"], params["bn_beta"]
    mean, var = params["bn_mean"], params["bn_var"]
    eps = 1e-5
    y = jax.lax.conv_general_dilated(
        x_nchw, w, window_strides=(s, s), padding=[(pad, pad), (pad, pad)],
        rhs_dilation=(d, d), dimension_numbers=("NCHW", "OIHW", "NCHW"))
    scale = (gamma / jnp.sqrt(var + eps)).reshape(1, -1, 1, 1)
    bias = (beta - mean * gamma / jnp.sqrt(var + eps)).reshape(1, -1, 1, 1)
    y = y * scale + bias
    return y * jax.nn.sigmoid(y) if act else y


# ----------------------------------------------------------------------------
if __name__ == "__main__":
    key = jax.random.PRNGKey(0)
    N, H, W = 2, 16, 16
    c1 = 4

    def make_params(kp, c_in, c_out, kk):
        k_w, k_g, k_b, k_m, k_v = jax.random.split(kp, 5)
        return {
            "conv_w": jax.random.normal(k_w, (c_out, c_in, kk, kk), dtype=jnp.float32) * 0.1,
            "bn_gamma": 1.0 + 0.1 * jax.random.normal(k_g, (c_out,), dtype=jnp.float32),
            "bn_beta": 0.1 * jax.random.normal(k_b, (c_out,), dtype=jnp.float32),
            "bn_mean": 0.1 * jax.random.normal(k_m, (c_out,), dtype=jnp.float32),
            "bn_var": jnp.abs(1.0 + 0.1 * jax.random.normal(k_v, (c_out,), dtype=jnp.float32)),
        }

    k_x, k_p1, k_p2 = jax.random.split(key, 3)
    x = jax.random.normal(k_x, (N, c1, H, W), dtype=jnp.float32)

    # Two C3k2-style configurations: 3x3 s=1 and 1x1 s=1 (cv1/cv2-style).
    for kk, c2, kp in ((3, 8, k_p1), (1, 8, k_p2)):
        params = make_params(kp, c1, c2, kk)
        fwd = jax.jit(functools.partial(conv_forward, k=kk, s=1))
        out = jax.block_until_ready(fwd(x, params))
        ref = jax.block_until_ready(conv_forward_ref(x, params, k=kk, s=1))
        assert out.shape == ref.shape, (out.shape, ref.shape)
        max_err = float(jnp.max(jnp.abs(out - ref)))
        # bf16 MXU operands + tanh-form sigmoid => small delta vs the f32 reference.
        assert max_err < 4e-2, (kk, max_err)

    print("KERNEL_OK")
</pallas_src>

<mosaic_0001>
module attributes {stable_mosaic.version = 11 : i64} {
  func.func @_conv_bn_silu_kernel(%arg0: i32, %arg1: i32, %arg2: memref<1x18x18x4xbf16, #tpu.memory_space<vmem>>, %arg3: memref<3x12x128xbf16, #tpu.memory_space<vmem>>, %arg4: memref<1x128xf32, #tpu.memory_space<vmem>>, %arg5: memref<1x16x16x128xf32, #tpu.memory_space<vmem>>, %arg6: memref<256x128xf32, #tpu.memory_space<vmem>>) attributes {dimension_semantics = [#tpu.dimension_semantics<parallel>, #tpu.dimension_semantics<parallel>], iteration_bounds = array<i64: 2, 1>, scalar_prefetch = 0 : i64, scratch_operands = 1 : i64, tpu.core_type = #tpu.core_type<tc>, window_params = [{transform_indices = @transform_0, window_bounds = array<i64: 1, 18, 18, 4>}, {pipeline_mode = #tpu.pipeline_mode<synchronous>, transform_indices = @transform_1, window_bounds = array<i64: 3, 12, 128>}, {pipeline_mode = #tpu.pipeline_mode<synchronous>, transform_indices = @transform_2, window_bounds = array<i64: 1, 128>}, {transform_indices = @transform_3, window_bounds = array<i64: 1, 16, 16, 128>}]} {
    %c0 = arith.constant 0 : index
    %c0_0 = arith.constant 0 : index
    %c0_1 = arith.constant 0 : index
    %c0_2 = arith.constant 0 : index
    %0 = vector.load %arg2[%c0, %c0_0, %c0_1, %c0_2] : memref<1x18x18x4xbf16, #tpu.memory_space<vmem>>, vector<1x18x18x4xbf16>
    %1 = vector.shape_cast %0 : vector<1x18x18x4xbf16> to vector<18x18x4xbf16>
    %2 = vector.extract_strided_slice %1 {offsets = [0, 0, 0], sizes = [16, 18, 4], strides = [1, 1, 1]} : vector<18x18x4xbf16> to vector<16x18x4xbf16>
    %3 = vector.extract_strided_slice %2 {offsets = [0, 0, 0], sizes = [16, 16, 4], strides = [1, 1, 1]} : vector<16x18x4xbf16> to vector<16x16x4xbf16>
    %4 = vector.extract_strided_slice %2 {offsets = [0, 1, 0], sizes = [16, 16, 4], strides = [1, 1, 1]} : vector<16x18x4xbf16> to vector<16x16x4xbf16>
    %5 = vector.extract_strided_slice %2 {offsets = [0, 2, 0], sizes = [16, 16, 4], strides = [1, 1, 1]} : vector<16x18x4xbf16> to vector<16x16x4xbf16>
    %6 = tpu.concatenate %3, %4, %5 in 2 : vector<16x16x4xbf16>, vector<16x16x4xbf16>, vector<16x16x4xbf16> -> vector<16x16x12xbf16>
    %7 = vector.shape_cast %6 : vector<16x16x12xbf16> to vector<256x12xbf16>
    %c0_3 = arith.constant 0 : index
    %c0_4 = arith.constant 0 : index
    %c0_5 = arith.constant 0 : index
    %8 = vector.load %arg3[%c0_3, %c0_4, %c0_5] : memref<3x12x128xbf16, #tpu.memory_space<vmem>>, vector<1x12x128xbf16>
    %9 = vector.shape_cast %8 : vector<1x12x128xbf16> to vector<12x128xbf16>
    %cst = arith.constant dense<0.000000e+00> : vector<256x128xf32>
    %10 = tpu.matmul %7, %9, %cst {dimension_numbers = #tpu.dot_dimension_numbers<[1], [0], [0], [1], [0, 0, 1, 1], [], []>} : vector<256x12xbf16>, vector<12x128xbf16>, vector<256x128xf32> -> vector<256x128xf32>
    %c0_6 = arith.constant 0 : index
    %c0_7 = arith.constant 0 : index
    %11 = vector.load %arg6[%c0_6, %c0_7] : memref<256x128xf32, #tpu.memory_space<vmem>>, vector<256x128xf32>
    tpu.vector_store %arg6[%c0_6, %c0_7], %10 {strides = array<i32>} : memref<256x128xf32, #tpu.memory_space<vmem>>, vector<256x128xf32>,
    %12 = vector.extract_strided_slice %1 {offsets = [1, 0, 0], sizes = [16, 18, 4], strides = [1, 1, 1]} : vector<18x18x4xbf16> to vector<16x18x4xbf16>
    %13 = vector.extract_strided_slice %12 {offsets = [0, 0, 0], sizes = [16, 16, 4], strides = [1, 1, 1]} : vector<16x18x4xbf16> to vector<16x16x4xbf16>
    %14 = vector.extract_strided_slice %12 {offsets = [0, 1, 0], sizes = [16, 16, 4], strides = [1, 1, 1]} : vector<16x18x4xbf16> to vector<16x16x4xbf16>
    %15 = vector.extract_strided_slice %12 {offsets = [0, 2, 0], sizes = [16, 16, 4], strides = [1, 1, 1]} : vector<16x18x4xbf16> to vector<16x16x4xbf16>
    %16 = tpu.concatenate %13, %14, %15 in 2 : vector<16x16x4xbf16>, vector<16x16x4xbf16>, vector<16x16x4xbf16> -> vector<16x16x12xbf16>
    %17 = vector.shape_cast %16 : vector<16x16x12xbf16> to vector<256x12xbf16>
    %c1 = arith.constant 1 : index
    %c0_8 = arith.constant 0 : index
    %c0_9 = arith.constant 0 : index
    %18 = vector.load %arg3[%c1, %c0_8, %c0_9] : memref<3x12x128xbf16, #tpu.memory_space<vmem>>, vector<1x12x128xbf16>
    %19 = vector.shape_cast %18 : vector<1x12x128xbf16> to vector<12x128xbf16>
    %cst_10 = arith.constant dense<0.000000e+00> : vector<256x128xf32>
    %20 = tpu.matmul %17, %19, %cst_10 {dimension_numbers = #tpu.dot_dimension_numbers<[1], [0], [0], [1], [0, 0, 1, 1], [], []>} : vector<256x12xbf16>, vector<12x128xbf16>, vector<256x128xf32> -> vector<256x128xf32>
    %c0_11 = arith.constant 0 : index
    %c0_12 = arith.constant 0 : index
    %21 = vector.load %arg6[%c0_11, %c0_12] : memref<256x128xf32, #tpu.memory_space<vmem>>, vector<256x128xf32>
    %22 = arith.addf %21, %20 : vector<256x128xf32>
    %c0_13 = arith.constant 0 : index
    %c0_14 = arith.constant 0 : index
    %23 = vector.load %arg6[%c0_13, %c0_14] : memref<256x128xf32, #tpu.memory_space<vmem>>, vector<256x128xf32>
    tpu.vector_store %arg6[%c0_13, %c0_14], %22 {strides = array<i32>} : memref<256x128xf32, #tpu.memory_space<vmem>>, vector<256x128xf32>,
    %24 = vector.extract_strided_slice %1 {offsets = [2, 0, 0], sizes = [16, 18, 4], strides = [1, 1, 1]} : vector<18x18x4xbf16> to vector<16x18x4xbf16>
    %25 = vector.extract_strided_slice %24 {offsets = [0, 0, 0], sizes = [16, 16, 4], strides = [1, 1, 1]} : vector<16x18x4xbf16> to vector<16x16x4xbf16>
    %26 = vector.extract_strided_slice %24 {offsets = [0, 1, 0], sizes = [16, 16, 4], strides = [1, 1, 1]} : vector<16x18x4xbf16> to vector<16x16x4xbf16>
    %27 = vector.extract_strided_slice %24 {offsets = [0, 2, 0], sizes = [16, 16, 4], strides = [1, 1, 1]} : vector<16x18x4xbf16> to vector<16x16x4xbf16>
    %28 = tpu.concatenate %25, %26, %27 in 2 : vector<16x16x4xbf16>, vector<16x16x4xbf16>, vector<16x16x4xbf16> -> vector<16x16x12xbf16>
    %29 = vector.shape_cast %28 : vector<16x16x12xbf16> to vector<256x12xbf16>
    %c2 = arith.constant 2 : index
    %c0_15 = arith.constant 0 : index
    %c0_16 = arith.constant 0 : index
    %30 = vector.load %arg3[%c2, %c0_15, %c0_16] : memref<3x12x128xbf16, #tpu.memory_space<vmem>>, vector<1x12x128xbf16>
    %31 = vector.shape_cast %30 : vector<1x12x128xbf16> to vector<12x128xbf16>
    %cst_17 = arith.constant dense<0.000000e+00> : vector<256x128xf32>
    %32 = tpu.matmul %29, %31, %cst_17 {dimension_numbers = #tpu.dot_dimension_numbers<[1], [0], [0], [1], [0, 0, 1, 1], [], []>} : vector<256x12xbf16>, vector<12x128xbf16>, vector<256x128xf32> -> vector<256x128xf32>
    %c0_18 = arith.constant 0 : index
    %c0_19 = arith.constant 0 : index
    %33 = vector.load %arg6[%c0_18, %c0_19] : memref<256x128xf32, #tpu.memory_space<vmem>>, vector<256x128xf32>
    %34 = arith.addf %33, %32 : vector<256x128xf32>
    %c0_20 = arith.constant 0 : index
    %c0_21 = arith.constant 0 : index
    %35 = vector.load %arg6[%c0_20, %c0_21] : memref<256x128xf32, #tpu.memory_space<vmem>>, vector<256x128xf32>
    tpu.vector_store %arg6[%c0_20, %c0_21], %34 {strides = array<i32>} : memref<256x128xf32, #tpu.memory_space<vmem>>, vector<256x128xf32>,
    %c0_22 = arith.constant 0 : index
    %c0_23 = arith.constant 0 : index
    %36 = vector.load %arg6[%c0_22, %c0_23] : memref<256x128xf32, #tpu.memory_space<vmem>>, vector<256x128xf32>
    %c0_24 = arith.constant 0 : index
    %c0_25 = arith.constant 0 : index
    %37 = vector.load %arg4[%c0_24, %c0_25] : memref<1x128xf32, #tpu.memory_space<vmem>>, vector<1x128xf32>
    %38 = vector.broadcast %37 : vector<1x128xf32> to vector<256x128xf32>
    %39 = arith.addf %36, %38 : vector<256x128xf32>
    %cst_26 = arith.constant 5.000000e-01 : f32
    %40 = vector.broadcast %cst_26 : f32 to vector<256x128xf32>
    %41 = arith.mulf %40, %39 : vector<256x128xf32>
    %42 = math.tanh %41 : vector<256x128xf32>
    %cst_27 = arith.constant 1.000000e+00 : f32
    %43 = vector.broadcast %cst_27 : f32 to vector<256x128xf32>
    %44 = arith.addf %42, %43 : vector<256x128xf32>
    %cst_28 = arith.constant 5.000000e-01 : f32
    %45 = vector.broadcast %cst_28 : f32 to vector<256x128xf32>
    %46 = arith.mulf %45, %44 : vector<256x128xf32>
    %47 = arith.mulf %39, %46 : vector<256x128xf32>
    %48 = vector.shape_cast %47 : vector<256x128xf32> to vector<16x16x128xf32>
    %c0_29 = arith.constant 0 : index
    %c0_30 = arith.constant 0 : index
    %c0_31 = arith.constant 0 : index
    %c0_32 = arith.constant 0 : index
    %49 = vector.load %arg5[%c0_29, %c0_30, %c0_31, %c0_32] : memref<1x16x16x128xf32, #tpu.memory_space<vmem>>, vector<1x16x16x128xf32>
    %50 = vector.shape_cast %49 : vector<1x16x16x128xf32> to vector<16x16x128xf32>
    %51 = vector.shape_cast %48 : vector<16x16x128xf32> to vector<1x16x16x128xf32>
    tpu.vector_store %arg5[%c0_29, %c0_30, %c0_31, %c0_32], %51 {strides = array<i32>} : memref<1x16x16x128xf32, #tpu.memory_space<vmem>>, vector<1x16x16x128xf32>,
    return
  }
  func.func @transform_0(%arg0: i32, %arg1: i32) -> (i32, i32, i32, i32) {
    %c0_i32 = arith.constant 0 : i32
    %c0_i32_0 = arith.constant 0 : i32
    %c0_i32_1 = arith.constant 0 : i32
    %c0_i32_2 = arith.constant 0 : i32
    return %arg0, %c0_i32, %c0_i32_0, %c0_i32_1 : i32, i32, i32, i32
  }
  func.func @transform_1(%arg0: i32, %arg1: i32) -> (i32, i32, i32) {
    %c0_i32 = arith.constant 0 : i32
    %c0_i32_0 = arith.constant 0 : i32
    %c0_i32_1 = arith.constant 0 : i32
    %c0_i32_2 = arith.constant 0 : i32
    return %c0_i32, %c0_i32_0, %c0_i32_1 : i32, i32, i32
  }
  func.func @transform_2(%arg0: i32, %arg1: i32) -> (i32, i32) {
    %c0_i32 = arith.constant 0 : i32
    %c0_i32_0 = arith.constant 0 : i32
    %c0_i32_1 = arith.constant 0 : i32
    return %c0_i32, %c0_i32_0 : i32, i32
  }
  func.func @transform_3(%arg0: i32, %arg1: i32) -> (i32, i32, i32, i32) {
    %c0_i32 = arith.constant 0 : i32
    %c0_i32_0 = arith.constant 0 : i32
    %c0_i32_1 = arith.constant 0 : i32
    return %arg0, %arg1, %c0_i32, %c0_i32_0 : i32, i32, i32, i32
  }
}

</mosaic_0001>

<llo_original>
// kernel: conv_forward.1
$region0: #{conv_forward.1}
  #allocation0 [shape = 'u32[]', space=smem, size = 0x4, offset = 0x4, fixed_abs, tag = 'smem constant byte address 0x4 - core index']
  #allocation1 [shape = 'u32[72,128]{1,0:T(1,128)}', space=vmem, size = 0x9000, scoped, tag = 'internal scratch']
  #allocation2 [shape = 'f32[256,128]{1,0:T(8,128)}', space=vmem, size = 0x20000, scoped, tag = 'scratch operand']
  %s0 = inlined_call_operand.vmem [shape: bf16[2,18,18,4], index: 0, kind: input, shape index: {}]
  %s1 = inlined_call_operand.vmem [shape: bf16[3,12,128], index: 1, kind: input, shape index: {}]
  %s2 = inlined_call_operand.vmem [shape: f32[1,128], index: 2, kind: input, shape index: {}]
  %s3 = inlined_call_operand.vmem [shape: f32[2,16,16,128], index: 3, kind: output, shape index: {}]
  %s4 = sld [smem:[#allocation0]]
  $region45: #{conv_forward.1} parent=0
    _
  %s6 = ssub.s32 1, %s4
  %s7 = scalar_select 0, %s6, %s4
  loop: start=0, step=1, limit=4
  $region2: #{conv_forward.1} parent=0 // loop_pre_header
    _
  $region3: #{conv_forward.1} parent=0 // loop_header
    %s9 = sphi 0, %s13
    %p10 = scmp.ge.s32.totalorder %s9, 4
    %s16 = sphi 0, %s28
    %s17 = sphi 0, %s24
    %s18 = sphi 0, %s16
    %s19 = sphi 0, %s17
    %s20 = sphi 0, %s18
    %s21 = sphi 0, %s19
    %s31 = sphi 0, %s33
    %s34 = sphi 0, %s31
    %s35 = sphi 0, %s34
    %s51 = sphi 0, %s35
    %s55 = sphi 0, %s55
    %s57 = sphi 0, %s55
    %s58 = sphi 0, %s57
    %s72 = sphi 0, %s58
    %s76 = sphi 0, %s76
    %s78 = sphi 0, %s76
    %s79 = sphi 0, %s78
    %s93 = sphi 0, %s79
    %s101 = sphi 0, %s103
    %s104 = sphi 0, %s101
    %s105 = sphi 0, %s104
    %s121 = sphi 0, %s105
  $region4: #{conv_forward.1} parent=0 // loop_header_branch
    %12 = sbr.rel (%p10) target = $region8
  $region5: #{conv_forward.1} parent=0 // loop_body
    %s14 = ssub.s32 %s9, 1
    %s15 = ssub.s32 %s9, 2
    %s22 = sadd.s32 1, %s17
    %p23 = scmp.ge.s32.totalorder %s22, 1
    %s24 = scalar_select %p23, 0, %s22
    %s25 = sadd.s32 1, %s16
    %s26 = scalar_select %p23, %s25, %s16
    %p27 = scmp.ge.s32.totalorder %s26, 2
    %s28 = scalar_select %p27, 0, %s26
    %s29 = ssub.s32 %s16, %s28
    %p30 = scmp.eq.s32.totalorder %s29, 0
    %s32 = sadd.s32 %s31, 1
    %s33 = scalar_select %p30, %s31, %s32
    %p36 = pneg %p30
    %p37 = scmp.eq.s32.totalorder %s9, 1
    %p38 = por %p36, %p37
    %p39 = scmp.ne.s32.totalorder %s31, %s34
    %p40 = scmp.eq.s32.totalorder %s9, 0
    %p41 = por %p39, %p40
    %p42 = scmp.ne.s32.totalorder %s31, %s34
    %p43 = scmp.eq.s32.totalorder %s14, 1
    %p44 = por %p42, %p43
    %p45 = scmp.ne.s32.totalorder %s34, %s35
    %p46 = scmp.eq.s32.totalorder %s14, 0
    %p47 = por %p45, %p46
    %p48 = scmp.ne.s32.totalorder %s34, %s35
    %p49 = scmp.eq.s32.totalorder %s15, 1
    %p50 = por %p48, %p49
    %p52 = scmp.ne.s32.totalorder %s35, %s51
    %p53 = scmp.eq.s32.totalorder %s15, 0
    %p54 = por %p52, %p53
    %s56 = sadd.s32 %s55, 1
    %p59 = scmp.eq.s32.totalorder %s9, 1
    %p60 = scmp.ne.s32.totalorder %s55, %s57
    %p61 = scmp.eq.s32.totalorder %s9, 0
    %p62 = por %p60, %p61
    %p63 = scmp.ne.s32.totalorder %s55, %s57
    %p64 = scmp.eq.s32.totalorder %s14, 1
    %p65 = por %p63, %p64
    %p66 = scmp.ne.s32.totalorder %s57, %s58
    %p67 = scmp.eq.s32.totalorder %s14, 0
    %p68 = por %p66, %p67
    %p69 = scmp.ne.s32.totalorder %s57, %s58
    %p70 = scmp.eq.s32.totalorder %s15, 1
    %p71 = por %p69, %p70
    %p73 = scmp.ne.s32.totalorder %s58, %s72
    %p74 = scmp.eq.s32.totalorder %s15, 0
    %p75 = por %p73, %p74
    %s77 = sadd.s32 %s76, 1
    %p80 = scmp.eq.s32.totalorder %s9, 1
    %p81 = scmp.ne.s32.totalorder %s76, %s78
    %p82 = scmp.eq.s32.totalorder %s9, 0
    %p83 = por %p81, %p82
    %p84 = scmp.ne.s32.totalorder %s76, %s78
    %p85 = scmp.eq.s32.totalorder %s14, 1
    %p86 = por %p84, %p85
    %p87 = scmp.ne.s32.totalorder %s78, %s79
    %p88 = scmp.eq.s32.totalorder %s14, 0
    %p89 = por %p87, %p88
    %p90 = scmp.ne.s32.totalorder %s78, %s79
    %p91 = scmp.eq.s32.totalorder %s15, 1
    %p92 = por %p90, %p91
    %p94 = scmp.ne.s32.totalorder %s79, %s93
    %p95 = scmp.eq.s32.totalorder %s15, 0
    %p96 = por %p94, %p95
    %s97 = ssub.s32 %s16, %s28
    %s98 = ssub.s32 %s17, %s24
    %s99 = sor.u32 %s97, %s98
    %p100 = scmp.eq.s32.totalorder %s99, 0
    %s102 = sadd.s32 %s101, 1
    %s103 = scalar_select %p100, %s101, %s102
    %p106 = pneg %p100
    %p107 = scmp.eq.s32.totalorder %s9, 1
    %p108 = por %p106, %p107
    %p109 = scmp.ne.s32.totalorder %s101, %s104
    %p110 = scmp.eq.s32.totalorder %s9, 0
    %p111 = por %p109, %p110
    %p112 = scmp.ne.s32.totalorder %s101, %s104
    %p113 = scmp.eq.s32.totalorder %s14, 1
    %p114 = por %p112, %p113
    %p115 = scmp.ne.s32.totalorder %s104, %s105
    %p116 = scmp.eq.s32.totalorder %s14, 0
    %p117 = por %p115, %p116
    %p118 = scmp.ne.s32.totalorder %s104, %s105
    %p119 = scmp.eq.s32.totalorder %s15, 1
    %p120 = por %p118, %p119
    %p122 = scmp.ne.s32.totalorder %s105, %s121
    %p123 = scmp.eq.s32.totalorder %s15, 0
    %p124 = por %p122, %p123
    %p125 = scmp.le.s32.totalorder 1, %s9
    %p126 = scmp.lt.s32.totalorder %s9, 3
    %p127 = pnand %p125, %p126
    %p128 = pneg %p127
    // Predicated region
    $region9: #{conv_forward.1} parent=5 // pred_check
      _
    $region10: #{conv_forward.1} parent=5 // pred_check_branch
      %130 = sbr.rel (%p127) target = $region12
    $region11: #{conv_forward.1} parent=5 // pred_region
      %s131 = ssub.s32 %s9, 1
      // Predicated region
      $region13: #{conv_forward.1} parent=11 // pred_check
        %p132 = pneg %p68
      $region14: #{conv_forward.1} parent=11 // pred_check_branch
        %134 = sbr.rel (%p132) target = $region16
      $region15: #{conv_forward.1} parent=11 // pred_region
        _
      $region16: #{conv_forward.1} parent=11 // pred_fallthru
        _
      // Predicated region
      $region17: #{conv_forward.1} parent=11 // pred_check
        %p135 = pneg %p89
      $region18: #{conv_forward.1} parent=11 // pred_check_branch
        %137 = sbr.rel (%p135) target = $region20
      $region19: #{conv_forward.1} parent=11 // pred_region
        _
      $region20: #{conv_forward.1} parent=11 // pred_fallthru
        _
    $region12: #{conv_forward.1} parent=5 // pred_fallthru
      _
    %p138 = scmp.lt.s32.totalorder %s9, 2
    // Predicated region
    $region21: #{conv_forward.1} parent=5 // pred_check
      %p139 = pneg %p138
    $region22: #{conv_forward.1} parent=5 // pred_check_branch
      %141 = sbr.rel (%p139) target = $region24
    $region23: #{conv_forward.1} parent=5 // pred_region
      // Predicated region
      $region25: #{conv_forward.1} parent=23 // pred_check
        %p142 = pneg %p41
      $region26: #{conv_forward.1} parent=23 // pred_check_branch
        %144 = sbr.rel (%p142) target = $region28
      $region27: #{conv_forward.1} parent=23 // pred_region
        %p145 = scmp.lt.s32.totalorder %s16, 1
        %s146 = scalar_select %p145, %s16, 1
        %s147 = smul.addr %s146, 54
        %s148 = smul.addr %s147, 4
        %s149 = scalar_lea.vmem %s0, %s148
      $region28: #{conv_forward.1} parent=23 // pred_fallthru
        _
    $region24: #{conv_forward.1} parent=5 // pred_fallthru
      _
    %p150 = scmp.le.s32.totalorder 1, %s9
    %p151 = scmp.lt.s32.totalorder %s9, 3
    %p152 = pnand %p150, %p151
    %p153 = pneg %p152
    // Predicated region
    $region29: #{conv_forward.1} parent=5 // pred_check
      _
    $region30: #{conv_forward.1} parent=5 // pred_check_branch
      %155 = sbr.rel (%p152) target = $region32
    $region31: #{conv_forward.1} parent=5 // pred_region
      %s156 = ssub.s32 %s9, 1
      %p157 = scmp.lt.s32.totalorder %s18, 1
      %s158 = scalar_select %p157, %s18, 1
      %s159 = smul.addr %s158, 54
      %s160 = smul.addr %s159, 4
      %s161 = scalar_lea.vmem %s0, %s160
      %p162 = pneg %p47
      %p163 = pneg %p44
      %p164 = pneg %p68
      %p165 = pneg %p65
      %p166 = pneg %p89
      %p167 = pneg %p86
      %p168 = pneg %p117
      %p169 = pneg %p114
      %s170 = smul.u32 16, %s19
      %p171 = scmp.lt.s32.totalorder %s18, 1
      %s172 = scalar_select %p171, %s18, 1
      %p173 = scmp.lt.s32.totalorder %s170, 15
      %s174 = scalar_select %p173, %s170, 15
      %s175 = smul.addr %s174, 2
      %s176 = smul.addr %s172, 32
      %s177 = sadd.s32 %s175, %s176
      %s178 = smul.addr %s177, 8
      %s179 = scalar_lea.vmem %s3, %s178
      %p180 = scmp.lt.s32.totalorder %s18, 1
      %s181 = scalar_select %p180, %s18, 1
      %s182 = smul.addr %s181, 54
      %s183 = smul.addr %s182, 4
      %s184 = scalar_lea.vmem %s0, %s183
      %s185 = smul.u32 16, %s19
      %p186 = scmp.lt.s32.totalorder %s18, 1
      %s187 = scalar_select %p186, %s18, 1
      %p188 = scmp.lt.s32.totalorder %s185, 15
      %s189 = scalar_select %p188, %s185, 15
      %s190 = smul.addr %s189, 2
      %s191 = smul.addr %s187, 32
      %s192 = sadd.s32 %s190, %s191
      %s193 = smul.addr %s192, 8
      %s194 = scalar_lea.vmem %s3, %s193
      %s195 = smul.u32 16, %s19
      %v197 = vld [vmem:[%s184] sm:$0xf]
      %v198 = vld [vmem:[%s184 + $0x4] sm:$0xf]
      %v199 = vld [vmem:[%s184 + $0x8] sm:$0x1]
      %v200 = vld [vmem:[%s184 + $0xc] sm:$0xf]
      %v201 = vld [vmem:[%s184 + $0x10] sm:$0xf]
      %v202 = vld [vmem:[%s184 + $0x14] sm:$0x1]
      %v203 = vld [vmem:[%s184 + $0x18] sm:$0xf]
      %v204 = vld [vmem:[%s184 + $0x1c] sm:$0xf]
      %v205 = vld [vmem:[%s184 + $0x20] sm:$0x1]
      %v206 = vld [vmem:[%s184 + $0x24] sm:$0xf]
      %v207 = vld [vmem:[%s184 + $0x28] sm:$0xf]
      %v208 = vld [vmem:[%s184 + $0x2c] sm:$0x1]
      %v209 = vld [vmem:[%s184 + $0x30] sm:$0xf]
      %v210 = vld [vmem:[%s184 + $0x34] sm:$0xf]
      %v211 = vld [vmem:[%s184 + $0x38] sm:$0x1]
      %v212 = vld [vmem:[%s184 + $0x3c] sm:$0xf]
      %v213 = vld [vmem:[%s184 + $0x40] sm:$0xf]
      %v214 = vld [vmem:[%s184 + $0x44] sm:$0x1]
      %v215 = vld [vmem:[%s184 + $0x48] sm:$0xf]
      %v216 = vld [vmem:[%s184 + $0x4c] sm:$0xf]
      %v217 = vld [vmem:[%s184 + $0x50] sm:$0x1]
      %v218 = vld [vmem:[%s184 + $0x54] sm:$0xf]
      %v219 = vld [vmem:[%s184 + $0x58] sm:$0xf]
      %v220 = vld [vmem:[%s184 + $0x5c] sm:$0x1]
      %v221 = vld [vmem:[%s184 + $0x60] sm:$0xf]
      %v222 = vld [vmem:[%s184 + $0x64] sm:$0xf]
      %v223 = vld [vmem:[%s184 + $0x68] sm:$0x1]
      %v224 = vld [vmem:[%s184 + $0x6c] sm:$0xf]
      %v225 = vld [vmem:[%s184 + $0x70] sm:$0xf]
      %v226 = vld [vmem:[%s184 + $0x74] sm:$0x1]
      %v227 = vld [vmem:[%s184 + $0x78] sm:$0xf]
      %v228 = vld [vmem:[%s184 + $0x7c] sm:$0xf]
      %v229 = vld [vmem:[%s184 + $0x80] sm:$0x1]
      %v230 = vld [vmem:[%s184 + $0x84] sm:$0xf]
      %v231 = vld [vmem:[%s184 + $0x88] sm:$0xf]
      %v232 = vld [vmem:[%s184 + $0x8c] sm:$0x1]
      %v233 = vld [vmem:[%s184 + $0x90] sm:$0xf]
      %v234 = vld [vmem:[%s184 + $0x94] sm:$0xf]
      %v235 = vld [vmem:[%s184 + $0x98] sm:$0x1]
      %v236 = vld [vmem:[%s184 + $0x9c] sm:$0xf]
      %v237 = vld [vmem:[%s184 + $0xa0] sm:$0xf]
      %v238 = vld [vmem:[%s184 + $0xa4] sm:$0x1]
      %v239 = vld [vmem:[%s184 + $0xa8] sm:$0xf]
      %v240 = vld [vmem:[%s184 + $0xac] sm:$0xf]
      %v241 = vld [vmem:[%s184 + $0xb0] sm:$0x1]
      %v242 = vld [vmem:[%s184 + $0xb4] sm:$0xf]
      %v243 = vld [vmem:[%s184 + $0xb8] sm:$0xf]
      %v244 = vld [vmem:[%s184 + $0xbc] sm:$0x1]
      %v245 = vld [vmem:[%s184 + $0xc0] sm:$0xf]
      %v246 = vld [vmem:[%s184 + $0xc4] sm:$0xf]
      %v247 = vld [vmem:[%s184 + $0xc8] sm:$0x1]
      %v248 = vld [vmem:[%s184 + $0xcc] sm:$0xf]
      %v249 = vld [vmem:[%s184 + $0xd0] sm:$0xf]
      %v250 = vld [vmem:[%s184 + $0xd4] sm:$0x1]
      %v283 = vunpack.c.l.b16 %v197
      %v284 = vunpack.c.l.b16 %v198
      %v285 = vunpack.c.l.b16 %v200
      %v286 = vunpack.c.l.b16 %v201
      %v287 = vunpack.c.l.b16 %v203
      %v288 = vunpack.c.l.b16 %v204
      %v289 = vunpack.c.l.b16 %v206
      %v290 = vunpack.c.l.b16 %v207
      %v291 = vunpack.c.l.b16 %v209
      %v292 = vunpack.c.l.b16 %v210
      %v293 = vunpack.c.l.b16 %v212
      %v294 = vunpack.c.l.b16 %v213
      %v295 = vunpack.c.l.b16 %v215
      %v296 = vunpack.c.l.b16 %v216
      %v297 = vunpack.c.l.b16 %v218
      %v298 = vunpack.c.l.b16 %v219
      %v299 = vunpack.c.l.b16 %v221
      %v300 = vunpack.c.l.b16 %v222
      %v301 = vunpack.c.l.b16 %v224
      %v302 = vunpack.c.l.b16 %v225
      %v303 = vunpack.c.l.b16 %v227
      %v304 = vunpack.c.l.b16 %v228
      %v305 = vunpack.c.l.b16 %v230
      %v306 = vunpack.c.l.b16 %v231
      %v307 = vunpack.c.l.b16 %v233
      %v308 = vunpack.c.l.b16 %v234
      %v309 = vunpack.c.l.b16 %v236
      %v310 = vunpack.c.l.b16 %v237
      %v311 = vunpack.c.l.b16 %v239
      %v312 = vunpack.c.l.b16 %v240
      %v313 = vunpack.c.l.b16 %v242
      %v314 = vunpack.c.l.b16 %v243
      %v315 = vpack.c.b16 %v284, %v283
      %v316 = vpack.c.b16 %v286, %v285
      %v317 = vpack.c.b16 %v288, %v287
      %v318 = vpack.c.b16 %v290, %v289
      %v319 = vpack.c.b16 %v292, %v291
      %v320 = vpack.c.b16 %v294, %v293
      %v321 = vpack.c.b16 %v296, %v295
      %v322 = vpack.c.b16 %v298, %v297
      %v323 = vpack.c.b16 %v300, %v299
      %v324 = vpack.c.b16 %v302, %v301
      %v325 = vpack.c.b16 %v304, %v303
      %v326 = vpack.c.b16 %v306, %v305
      %v327 = vpack.c.b16 %v308, %v307
      %v328 = vpack.c.b16 %v310, %v309
      %v329 = vpack.c.b16 %v312, %v311
      %v330 = vpack.c.b16 %v314, %v313
      %v347 = vunpack.c.l.b16 %v199
      %v348 = vunpack.c.l.b16 %v202
      %v349 = vunpack.c.l.b16 %v205
      %v350 = vunpack.c.l.b16 %v208
      %v351 = vunpack.c.l.b16 %v211
      %v352 = vunpack.c.l.b16 %v214
      %v353 = vunpack.c.l.b16 %v217
      %v354 = vunpack.c.l.b16 %v220
      %v355 = vunpack.c.l.b16 %v223
      %v356 = vunpack.c.l.b16 %v226
      %v357 = vunpack.c.l.b16 %v229
      %v358 = vunpack.c.l.b16 %v232
      %v359 = vunpack.c.l.b16 %v235
      %v360 = vunpack.c.l.b16 %v238
      %v361 = vunpack.c.l.b16 %v241
      %v362 = vunpack.c.l.b16 %v244
      %v363 = vpack.c.b16 %v347, %v347
      %v364 = vpack.c.b16 %v348, %v348
      %v365 = vpack.c.b16 %v349, %v349
      %v366 = vpack.c.b16 %v350, %v350
      %v367 = vpack.c.b16 %v351, %v351
      %v368 = vpack.c.b16 %v352, %v352
      %v369 = vpack.c.b16 %v353, %v353
      %v370 = vpack.c.b16 %v354, %v354
      %v371 = vpack.c.b16 %v355, %v355
      %v372 = vpack.c.b16 %v356, %v356
      %v373 = vpack.c.b16 %v357, %v357
      %v374 = vpack.c.b16 %v358, %v358
      %v375 = vpack.c.b16 %v359, %v359
      %v376 = vpack.c.b16 %v360, %v360
      %v377 = vpack.c.b16 %v361, %v361
      %v378 = vpack.c.b16 %v362, %v362
      %vm379 = vsmask.f32 7424
      %v381 = vshrl.u32 %v315, 16
      %v383 = vshll.u32 %v315, 16
      %v385 = vrot.slane %v383, 1
      %v386 = vor.u32 %v381, %v385
      %v388 = vshll.u32 %v363, 16
      %v390 = vrot.slane %v388, 1
      %v391 = vsel %vm379, %v386, %v390
      %v393 = vshrl.u32 %v316, 16
      %v395 = vshll.u32 %v316, 16
      %v397 = vrot.slane %v395, 1
      %v398 = vor.u32 %v393, %v397
      %v400 = vshll.u32 %v364, 16
      %v402 = vrot.slane %v400, 1
      %v403 = vsel %vm379, %v398, %v402
      %v405 = vshrl.u32 %v317, 16
      %v407 = vshll.u32 %v317, 16
      %v409 = vrot.slane %v407, 1
      %v410 = vor.u32 %v405, %v409
      %v412 = vshll.u32 %v365, 16
      %v414 = vrot.slane %v412, 1
      %v415 = vsel %vm379, %v410, %v414
      %v417 = vshrl.u32 %v318, 16
      %v419 = vshll.u32 %v318, 16
      %v421 = vrot.slane %v419, 1
      %v422 = vor.u32 %v417, %v421
      %v424 = vshll.u32 %v366, 16
      %v426 = vrot.slane %v424, 1
      %v427 = vsel %vm379, %v422, %v426
      %v429 = vshrl.u32 %v319, 16
      %v431 = vshll.u32 %v319, 16
      %v433 = vrot.slane %v431, 1
      %v434 = vor.u32 %v429, %v433
      %v436 = vshll.u32 %v367, 16
      %v438 = vrot.slane %v436, 1
      %v439 = vsel %vm379, %v434, %v438
      %v441 = vshrl.u32 %v320, 16
      %v443 = vshll.u32 %v320, 16
      %v445 = vrot.slane %v443, 1
      %v446 = vor.u32 %v441, %v445
      %v448 = vshll.u32 %v368, 16
      %v450 = vrot.slane %v448, 1
      %v451 = vsel %vm379, %v446, %v450
      %v453 = vshrl.u32 %v321, 16
      %v455 = vshll.u32 %v321, 16
      %v457 = vrot.slane %v455, 1
      %v458 = vor.u32 %v453, %v457
      %v460 = vshll.u32 %v369, 16
      %v462 = vrot.slane %v460, 1
      %v463 = vsel %vm379, %v458, %v462
      %v465 = vshrl.u32 %v322, 16
      %v467 = vshll.u32 %v322, 16
      %v469 = vrot.slane %v467, 1
      %v470 = vor.u32 %v465, %v469
      %v472 = vshll.u32 %v370, 16
      %v474 = vrot.slane %v472, 1
      %v475 = vsel %vm379, %v470, %v474
      %v477 = vshrl.u32 %v323, 16
      %v479 = vshll.u32 %v323, 16
      %v481 = vrot.slane %v479, 1
      %v482 = vor.u32 %v477, %v481
      %v484 = vshll.u32 %v371, 16
      %v486 = vrot.slane %v484, 1
      %v487 = vsel %vm379, %v482, %v486
      %v489 = vshrl.u32 %v324, 16
      %v491 = vshll.u32 %v324, 16
      %v493 = vrot.slane %v491, 1
      %v494 = vor.u32 %v489, %v493
      %v496 = vshll.u32 %v372, 16
      %v498 = vrot.slane %v496, 1
      %v499 = vsel %vm379, %v494, %v498
      %v501 = vshrl.u32 %v325, 16
      %v503 = vshll.u32 %v325, 16
      %v505 = vrot.slane %v503, 1
      %v506 = vor.u32 %v501, %v505
      %v508 = vshll.u32 %v373, 16
      %v510 = vrot.slane %v508, 1
      %v511 = vsel %vm379, %v506, %v510
      %v513 = vshrl.u32 %v326, 16
      %v515 = vshll.u32 %v326, 16
      %v517 = vrot.slane %v515, 1
      %v518 = vor.u32 %v513, %v517
      %v520 = vshll.u32 %v374, 16
      %v522 = vrot.slane %v520, 1
      %v523 = vsel %vm379, %v518, %v522
      %v525 = vshrl.u32 %v327, 16
      %v527 = vshll.u32 %v327, 16
      %v529 = vrot.slane %v527, 1
      %v530 = vor.u32 %v525, %v529
      %v532 = vshll.u32 %v375, 16
      %v534 = vrot.slane %v532, 1
      %v535 = vsel %vm379, %v530, %v534
      %v537 = vshrl.u32 %v328, 16
      %v539 = vshll.u32 %v328, 16
      %v541 = vrot.slane %v539, 1
      %v542 = vor.u32 %v537, %v541
      %v544 = vshll.u32 %v376, 16
      %v546 = vrot.slane %v544, 1
      %v547 = vsel %vm379, %v542, %v546
      %v549 = vshrl.u32 %v329, 16
      %v551 = vshll.u32 %v329, 16
      %v553 = vrot.slane %v551, 1
      %v554 = vor.u32 %v549, %v553
      %v556 = vshll.u32 %v377, 16
      %v558 = vrot.slane %v556, 1
      %v559 = vsel %vm379, %v554, %v558
      %v561 = vshrl.u32 %v330, 16
      %v563 = vshll.u32 %v330, 16
      %v565 = vrot.slane %v563, 1
      %v566 = vor.u32 %v561, %v565
      %v568 = vshll.u32 %v378, 16
      %v570 = vrot.slane %v568, 1
      %v571 = vsel %vm379, %v566, %v570
      %572 = vrot.lane.b32.xlu0 %v391, 4
      %v573 = vpop.permute.xlu0 %572
      %574 = vrot.lane.b32.xlu0 %v403, 4
      %v575 = vpop.permute.xlu0 %574
      %576 = vrot.lane.b32.xlu0 %v415, 4
      %v577 = vpop.permute.xlu0 %576
      %578 = vrot.lane.b32.xlu0 %v427, 4
      %v579 = vpop.permute.xlu0 %578
      %580 = vrot.lane.b32.xlu0 %v439, 4
      %v581 = vpop.permute.xlu0 %580
      %582 = vrot.lane.b32.xlu0 %v451, 4
      %v583 = vpop.permute.xlu0 %582
      %584 = vrot.lane.b32.xlu0 %v463, 4
      %v585 = vpop.permute.xlu0 %584
      %586 = vrot.lane.b32.xlu0 %v475, 4
      %v587 = vpop.permute.xlu0 %586
      %588 = vrot.lane.b32.xlu0 %v487, 4
      %v589 = vpop.permute.xlu0 %588
      %590 = vrot.lane.b32.xlu0 %v499, 4
      %v591 = vpop.permute.xlu0 %590
      %592 = vrot.lane.b32.xlu0 %v511, 4
      %v593 = vpop.permute.xlu0 %592
      %594 = vrot.lane.b32.xlu0 %v523, 4
      %v595 = vpop.permute.xlu0 %594
      %596 = vrot.lane.b32.xlu0 %v535, 4
      %v597 = vpop.permute.xlu0 %596
      %598 = vrot.lane.b32.xlu0 %v547, 4
      %v599 = vpop.permute.xlu0 %598
      %600 = vrot.lane.b32.xlu0 %v559, 4
      %v601 = vpop.permute.xlu0 %600
      %602 = vrot.lane.b32.xlu0 %v571, 4
      %v603 = vpop.permute.xlu0 %602
      %vm604 = vcmask 1046528
      %v605 = vrot.slane %v315, 1
      %v606 = vrot.slane %v363, 1
      %v607 = vsel %vm604, %v605, %v606
      %v608 = vrot.slane %v316, 1
      %v609 = vrot.slane %v364, 1
      %v610 = vsel %vm604, %v608, %v609
      %v611 = vrot.slane %v317, 1
      %v612 = vrot.slane %v365, 1
      %v613 = vsel %vm604, %v611, %v612
      %v614 = vrot.slane %v318, 1
      %v615 = vrot.slane %v366, 1
      %v616 = vsel %vm604, %v614, %v615
      %v617 = vrot.slane %v319, 1
      %v618 = vrot.slane %v367, 1
      %v619 = vsel %vm604, %v617, %v618
      %v620 = vrot.slane %v320, 1
      %v621 = vrot.slane %v368, 1
      %v622 = vsel %vm604, %v620, %v621
      %v623 = vrot.slane %v321, 1
      %v624 = vrot.slane %v369, 1
      %v625 = vsel %vm604, %v623, %v624
      %v626 = vrot.slane %v322, 1
      %v627 = vrot.slane %v370, 1
      %v628 = vsel %vm604, %v626, %v627
      %v629 = vrot.slane %v323, 1
      %v630 = vrot.slane %v371, 1
      %v631 = vsel %vm604, %v629, %v630
      %v632 = vrot.slane %v324, 1
      %v633 = vrot.slane %v372, 1
      %v634 = vsel %vm604, %v632, %v633
      %v635 = vrot.slane %v325, 1
      %v636 = vrot.slane %v373, 1
      %v637 = vsel %vm604, %v635, %v636
      %v638 = vrot.slane %v326, 1
      %v639 = vrot.slane %v374, 1
      %v640 = vsel %vm604, %v638, %v639
      %v641 = vrot.slane %v327, 1
      %v642 = vrot.slane %v375, 1
      %v643 = vsel %vm604, %v641, %v642
      %v644 = vrot.slane %v328, 1
      %v645 = vrot.slane %v376, 1
      %v646 = vsel %vm604, %v644, %v645
      %v647 = vrot.slane %v329, 1
      %v648 = vrot.slane %v377, 1
      %v649 = vsel %vm604, %v647, %v648
      %v650 = vrot.slane %v330, 1
      %v651 = vrot.slane %v378, 1
      %v652 = vsel %vm604, %v650, %v651
      %653 = vrot.lane.b32.xlu0 %v607, 8
      %v654 = vpop.permute.xlu0 %653
      %655 = vrot.lane.b32.xlu0 %v610, 8
      %v656 = vpop.permute.xlu0 %655
      %657 = vrot.lane.b32.xlu0 %v613, 8
      %v658 = vpop.permute.xlu0 %657
      %659 = vrot.lane.b32.xlu0 %v616, 8
      %v660 = vpop.permute.xlu0 %659
      %661 = vrot.lane.b32.xlu0 %v619, 8
      %v662 = vpop.permute.xlu0 %661
      %663 = vrot.lane.b32.xlu0 %v622, 8
      %v664 = vpop.permute.xlu0 %663
      %665 = vrot.lane.b32.xlu0 %v625, 8
      %v666 = vpop.permute.xlu0 %665
      %667 = vrot.lane.b32.xlu0 %v628, 8
      %v668 = vpop.permute.xlu0 %667
      %669 = vrot.lane.b32.xlu0 %v631, 8
      %v670 = vpop.permute.xlu0 %669
      %671 = vrot.lane.b32.xlu0 %v634, 8
      %v672 = vpop.permute.xlu0 %671
      %673 = vrot.lane.b32.xlu0 %v637, 8
      %v674 = vpop.permute.xlu0 %673
      %675 = vrot.lane.b32.xlu0 %v640, 8
      %v676 = vpop.permute.xlu0 %675
      %677 = vrot.lane.b32.xlu0 %v643, 8
      %v678 = vpop.permute.xlu0 %677
      %679 = vrot.lane.b32.xlu0 %v646, 8
      %v680 = vpop.permute.xlu0 %679
      %681 = vrot.lane.b32.xlu0 %v649, 8
      %v682 = vpop.permute.xlu0 %681
      %683 = vrot.lane.b32.xlu0 %v652, 8
      %v684 = vpop.permute.xlu0 %683
      %vm685 = vcmask 31744
      %v687 = vsel %vm685, %v315, %v573
      %v689 = vsel %vm685, %v316, %v575
      %v691 = vsel %vm685, %v317, %v577
      %v693 = vsel %vm685, %v318, %v579
      %v695 = vsel %vm685, %v319, %v581
      %v697 = vsel %vm685, %v320, %v583
      %v699 = vsel %vm685, %v321, %v585
      %v701 = vsel %vm685, %v322, %v587
      %v703 = vsel %vm685, %v323, %v589
      %v705 = vsel %vm685, %v324, %v591
      %v707 = vsel %vm685, %v325, %v593
      %v709 = vsel %vm685, %v326, %v595
      %v711 = vsel %vm685, %v327, %v597
      %v713 = vsel %vm685, %v328, %v599
      %v715 = vsel %vm685, %v329, %v601
      %v717 = vsel %vm685, %v330, %v603
      %vm718 = vcmask 64512
      %v720 = vsel %vm718, %v687, %v654
      %v722 = vsel %vm718, %v689, %v656
      %v724 = vsel %vm718, %v691, %v658
      %v726 = vsel %vm718, %v693, %v660
      %v728 = vsel %vm718, %v695, %v662
      %v730 = vsel %vm718, %v697, %v664
      %v732 = vsel %vm718, %v699, %v666
      %v734 = vsel %vm718, %v701, %v668
      %v736 = vsel %vm718, %v703, %v670
      %v738 = vsel %vm718, %v705, %v672
      %v740 = vsel %vm718, %v707, %v674
      %v742 = vsel %vm718, %v709, %v676
      %v744 = vsel %vm718, %v711, %v678
      %v746 = vsel %vm718, %v713, %v680
      %v748 = vsel %vm718, %v715, %v682
      %v750 = vsel %vm718, %v717, %v684
      %v751 = vld [vmem:[%s1] sm:$0xf]
      %v752 = vld [vmem:[%s1 + $0x4] sm:$0x3]
      %v755 = vunpack.c.l.b16 %v751
      %v756 = vunpack.c.l.b16 %v752
      %v757 = vpack.c.b16 %v756, %v755
      %vm758 = vcmask 97280
      %v759 = vsel %vm758, %v720, 0
      %v761 = vsel %vm758, %v722, 0
      %v763 = vsel %vm758, %v724, 0
      %v765 = vsel %vm758, %v726, 0
      %v767 = vsel %vm758, %v728, 0
      %v769 = vsel %vm758, %v730, 0
      %v771 = vsel %vm758, %v732, 0
      %v773 = vsel %vm758, %v734, 0
      %v775 = vsel %vm758, %v736, 0
      %v777 = vsel %vm758, %v738, 0
      %v779 = vsel %vm758, %v740, 0
      %v781 = vsel %vm758, %v742, 0
      %v783 = vsel %vm758, %v744, 0
      %v785 = vsel %vm758, %v746, 0
      %v787 = vsel %vm758, %v748, 0
      %v789 = vsel %vm758, %v750, 0
      %vm791 = vcmask 1045504
      %v793 = vsel %vm791, %v757, 0
      %795 = vmatpush.bf16.msra.mxu0 0
      %796 = vmatpush.bf16.msra.mxu0 0
      %797 = vmatpush.bf16.msra.mxu0 0
      %798 = vmatpush.bf16.msra.mxu0 0
      %799 = vmatpush.bf16.msra.mxu0 0
      %800 = vmatpush.bf16.msra.mxu0 0
      %801 = vmatpush.bf16.msra.mxu0 0
      %802 = vmatpush.bf16.msra.mxu0 %v793
      %803 = vmatmul.bf16.gmra.mxu0 %v759
      %v804 = vpop.f32.mrf.mxu0
      %v805 = vadd.f32 0.0, %v804
      %v806 = vpop.f32.mrf.mxu0
      %v807 = vadd.f32 0.0, %v806
      %808 = vmatmul.bf16.gmra.mxu0 %v761
      %v809 = vpop.f32.mrf.mxu0
      %v810 = vadd.f32 0.0, %v809
      %v811 = vpop.f32.mrf.mxu0
      %v812 = vadd.f32 0.0, %v811
      %813 = vmatmul.bf16.gmra.mxu0 %v763
      %v814 = vpop.f32.mrf.mxu0
      %v815 = vadd.f32 0.0, %v814
      %v816 = vpop.f32.mrf.mxu0
      %v817 = vadd.f32 0.0, %v816
      %818 = vmatmul.bf16.gmra.mxu0 %v765
      %v819 = vpop.f32.mrf.mxu0
      %v820 = vadd.f32 0.0, %v819
      %v821 = vpop.f32.mrf.mxu0
      %v822 = vadd.f32 0.0, %v821
      %823 = vmatmul.bf16.gmra.mxu0 %v767
      %v824 = vpop.f32.mrf.mxu0
      %v825 = vadd.f32 0.0, %v824
      %v826 = vpop.f32.mrf.mxu0
      %v827 = vadd.f32 0.0, %v826
      %828 = vmatmul.bf16.gmra.mxu0 %v769
      %v829 = vpop.f32.mrf.mxu0
      %v830 = vadd.f32 0.0, %v829
      %v831 = vpop.f32.mrf.mxu0
      %v832 = vadd.f32 0.0, %v831
      %833 = vmatmul.bf16.gmra.mxu0 %v771
      %v834 = vpop.f32.mrf.mxu0
      %v835 = vadd.f32 0.0, %v834
      %v836 = vpop.f32.mrf.mxu0
      %v837 = vadd.f32 0.0, %v836
      %838 = vmatmul.bf16.gmra.mxu0 %v773
      %v839 = vpop.f32.mrf.mxu0
      %v840 = vadd.f32 0.0, %v839
      %v841 = vpop.f32.mrf.mxu0
      %v842 = vadd.f32 0.0, %v841
      %843 = vmatmul.bf16.gmra.mxu0 %v775
      %v844 = vpop.f32.mrf.mxu0
      %v845 = vadd.f32 0.0, %v844
      %v846 = vpop.f32.mrf.mxu0
      %v847 = vadd.f32 0.0, %v846
      %848 = vmatmul.bf16.gmra.mxu0 %v777
      %v849 = vpop.f32.mrf.mxu0
      %v850 = vadd.f32 0.0, %v849
      %v851 = vpop.f32.mrf.mxu0
      %v852 = vadd.f32 0.0, %v851
      %853 = vmatmul.bf16.gmra.mxu0 %v779
      %v854 = vpop.f32.mrf.mxu0
      %v855 = vadd.f32 0.0, %v854
      %v856 = vpop.f32.mrf.mxu0
      %v857 = vadd.f32 0.0, %v856
      %858 = vmatmul.bf16.gmra.mxu0 %v781
      %v859 = vpop.f32.mrf.mxu0
      %v860 = vadd.f32 0.0, %v859
      %v861 = vpop.f32.mrf.mxu0
      %v862 = vadd.f32 0.0, %v861
      %863 = vmatmul.bf16.gmra.mxu0 %v783
      %v864 = vpop.f32.mrf.mxu0
      %v865 = vadd.f32 0.0, %v864
      %v866 = vpop.f32.mrf.mxu0
      %v867 = vadd.f32 0.0, %v866
      %868 = vmatmul.bf16.gmra.mxu0 %v785
      %v869 = vpop.f32.mrf.mxu0
      %v870 = vadd.f32 0.0, %v869
      %v871 = vpop.f32.mrf.mxu0
      %v872 = vadd.f32 0.0, %v871
      %873 = vmatmul.bf16.gmra.mxu0 %v787
      %v874 = vpop.f32.mrf.mxu0
      %v875 = vadd.f32 0.0, %v874
      %v876 = vpop.f32.mrf.mxu0
      %v877 = vadd.f32 0.0, %v876
      %878 = vmatmul.bf16.gmra.mxu0 %v789
      %v879 = vpop.f32.mrf.mxu0
      %v880 = vadd.f32 0.0, %v879
      %v881 = vpop.f32.mrf.mxu0
      %v882 = vadd.f32 0.0, %v881
      %883 = vdwg.mxu0
      %884 = vst [vmem:[#allocation2] sm:$0xff] %v805
      %885 = vst [vmem:[#allocation2 + $0x8] sm:$0xff] %v807
      %886 = vst [vmem:[#allocation2 + $0x10] sm:$0xff] %v810
      %887 = vst [vmem:[#allocation2 + $0x18] sm:$0xff] %v812
      %888 = vst [vmem:[#allocation2 + $0x20] sm:$0xff] %v815
      %889 = vst [vmem:[#allocation2 + $0x28] sm:$0xff] %v817
      %890 = vst [vmem:[#allocation2 + $0x30] sm:$0xff] %v820
      %891 = vst [vmem:[#allocation2 + $0x38] sm:$0xff] %v822
      %892 = vst [vmem:[#allocation2 + $0x40] sm:$0xff] %v825
      %893 = vst [vmem:[#allocation2 + $0x48] sm:$0xff] %v827
      %894 = vst [vmem:[#allocation2 + $0x50] sm:$0xff] %v830
      %895 = vst [vmem:[#allocation2 + $0x58] sm:$0xff] %v832
      %896 = vst [vmem:[#allocation2 + $0x60] sm:$0xff] %v835
      %897 = vst [vmem:[#allocation2 + $0x68] sm:$0xff] %v837
      %898 = vst [vmem:[#allocation2 + $0x70] sm:$0xff] %v840
      %899 = vst [vmem:[#allocation2 + $0x78] sm:$0xff] %v842
      %900 = vst [vmem:[#allocation2 + $0x80] sm:$0xff] %v845
      %901 = vst [vmem:[#allocation2 + $0x88] sm:$0xff] %v847
      %902 = vst [vmem:[#allocation2 + $0x90] sm:$0xff] %v850
      %903 = vst [vmem:[#allocation2 + $0x98] sm:$0xff] %v852
      %904 = vst [vmem:[#allocation2 + $0xa0] sm:$0xff] %v855
      %905 = vst [vmem:[#allocation2 + $0xa8] sm:$0xff] %v857
      %906 = vst [vmem:[#allocation2 + $0xb0] sm:$0xff] %v860
      %907 = vst [vmem:[#allocation2 + $0xb8] sm:$0xff] %v862
      %908 = vst [vmem:[#allocation2 + $0xc0] sm:$0xff] %v865
      %909 = vst [vmem:[#allocation2 + $0xc8] sm:$0xff] %v867
      %910 = vst [vmem:[#allocation2 + $0xd0] sm:$0xff] %v870
      %911 = vst [vmem:[#allocation2 + $0xd8] sm:$0xff] %v872
      %912 = vst [vmem:[#allocation2 + $0xe0] sm:$0xff] %v875
      %913 = vst [vmem:[#allocation2 + $0xe8] sm:$0xff] %v877
      %914 = vst [vmem:[#allocation2 + $0xf0] sm:$0xff] %v880
      %915 = vst [vmem:[#allocation2 + $0xf8] sm:$0xff] %v882
      %v918 = vunpack.c.l.b16 %v245
      %v919 = vunpack.c.l.b16 %v246
      %v920 = vpack.c.b16 %v919, %v918
      %v922 = vunpack.c.l.b16 %v247
      %v923 = vpack.c.b16 %v922, %v922
      %v925 = vshrl.u32 %v920, 16
      %v927 = vshll.u32 %v920, 16
      %v929 = vrot.slane %v927, 1
      %v930 = vor.u32 %v925, %v929
      %v932 = vshll.u32 %v923, 16
      %v934 = vrot.slane %v932, 1
      %v935 = vsel %vm379, %v930, %v934
      %936 = vrot.lane.b32.xlu0 %v935, 4
      %v937 = vpop.permute.xlu0 %936
      %v938 = vrot.slane %v920, 1
      %v939 = vrot.slane %v923, 1
      %v940 = vsel %vm604, %v938, %v939
      %941 = vrot.lane.b32.xlu0 %v940, 8
      %v942 = vpop.permute.xlu0 %941
      %v944 = vsel %vm685, %v920, %v937
      %v946 = vsel %vm718, %v944, %v942
      %s947 = scalar_lea.vmem %s1, 8
      %v948 = vld [vmem:[%s947] sm:$0xf]
      %v949 = vld [vmem:[%s947 + $0x4] sm:$0x3]
      %v952 = vunpack.c.l.b16 %v948
      %v953 = vunpack.c.l.b16 %v949
      %v954 = vpack.c.b16 %v953, %v952
      %v955 = vsel %vm758, %v946, 0
      %v958 = vsel %vm791, %v954, 0
      %960 = vmatpush.bf16.msra.mxu0 0
      %961 = vmatpush.bf16.msra.mxu0 0
      %962 = vmatpush.bf16.msra.mxu0 0
      %963 = vmatpush.bf16.msra.mxu0 0
      %964 = vmatpush.bf16.msra.mxu0 0
      %965 = vmatpush.bf16.msra.mxu0 0
      %966 = vmatpush.bf16.msra.mxu0 0
      %967 = vmatpush.bf16.msra.mxu0 %v958
      %968 = vmatmul.bf16.gmra.mxu0 %v761
      %v969 = vpop.f32.mrf.mxu0
      %v970 = vadd.f32 0.0, %v969
      %v971 = vpop.f32.mrf.mxu0
      %v972 = vadd.f32 0.0, %v971
      %973 = vmatmul.bf16.gmra.mxu0 %v763
      %v974 = vpop.f32.mrf.mxu0
      %v975 = vadd.f32 0.0, %v974
      %v976 = vpop.f32.mrf.mxu0
      %v977 = vadd.f32 0.0, %v976
      %978 = vmatmul.bf16.gmra.mxu0 %v765
      %v979 = vpop.f32.mrf.mxu0
      %v980 = vadd.f32 0.0, %v979
      %v981 = vpop.f32.mrf.mxu0
      %v982 = vadd.f32 0.0, %v981
      %983 = vmatmul.bf16.gmra.mxu0 %v767
      %v984 = vpop.f32.mrf.mxu0
      %v985 = vadd.f32 0.0, %v984
      %v986 = vpop.f32.mrf.mxu0
      %v987 = vadd.f32 0.0, %v986
      %988 = vmatmul.bf16.gmra.mxu0 %v769
      %v989 = vpop.f32.mrf.mxu0
      %v990 = vadd.f32 0.0, %v989
      %v991 = vpop.f32.mrf.mxu0
      %v992 = vadd.f32 0.0, %v991
      %993 = vmatmul.bf16.gmra.mxu0 %v771
      %v994 = vpop.f32.mrf.mxu0
      %v995 = vadd.f32 0.0, %v994
      %v996 = vpop.f32.mrf.mxu0
      %v997 = vadd.f32 0.0, %v996
      %998 = vmatmul.bf16.gmra.mxu0 %v773
      %v999 = vpop.f32.mrf.mxu0
      %v1000 = vadd.f32 0.0, %v999
      %v1001 = vpop.f32.mrf.mxu0
      %v1002 = vadd.f32 0.0, %v1001
      %1003 = vmatmul.bf16.gmra.mxu0 %v775
      %v1004 = vpop.f32.mrf.mxu0
      %v1005 = vadd.f32 0.0, %v1004
      %v1006 = vpop.f32.mrf.mxu0
      %v1007 = vadd.f32 0.0, %v1006
      %1008 = vmatmul.bf16.gmra.mxu0 %v777
      %v1009 = vpop.f32.mrf.mxu0
      %v1010 = vadd.f32 0.0, %v1009
      %v1011 = vpop.f32.mrf.mxu0
      %v1012 = vadd.f32 0.0, %v1011
      %1013 = vmatmul.bf16.gmra.mxu0 %v779
      %v1014 = vpop.f32.mrf.mxu0
      %v1015 = vadd.f32 0.0, %v1014
      %v1016 = vpop.f32.mrf.mxu0
      %v1017 = vadd.f32 0.0, %v1016
      %1018 = vmatmul.bf16.gmra.mxu0 %v781
      %v1019 = vpop.f32.mrf.mxu0
      %v1020 = vadd.f32 0.0, %v1019
      %v1021 = vpop.f32.mrf.mxu0
      %v1022 = vadd.f32 0.0, %v1021
      %1023 = vmatmul.bf16.gmra.mxu0 %v783
      %v1024 = vpop.f32.mrf.mxu0
      %v1025 = vadd.f32 0.0, %v1024
      %v1026 = vpop.f32.mrf.mxu0
      %v1027 = vadd.f32 0.0, %v1026
      %1028 = vmatmul.bf16.gmra.mxu0 %v785
      %v1029 = vpop.f32.mrf.mxu0
      %v1030 = vadd.f32 0.0, %v1029
      %v1031 = vpop.f32.mrf.mxu0
      %v1032 = vadd.f32 0.0, %v1031
      %1033 = vmatmul.bf16.gmra.mxu0 %v787
      %v1034 = vpop.f32.mrf.mxu0
      %v1035 = vadd.f32 0.0, %v1034
      %v1036 = vpop.f32.mrf.mxu0
      %v1037 = vadd.f32 0.0, %v1036
      %1038 = vmatmul.bf16.gmra.mxu0 %v789
      %v1039 = vpop.f32.mrf.mxu0
      %v1040 = vadd.f32 0.0, %v1039
      %v1041 = vpop.f32.mrf.mxu0
      %v1042 = vadd.f32 0.0, %v1041
      %1043 = vmatmul.bf16.gmra.mxu0 %v955
      %v1044 = vpop.f32.mrf.mxu0
      %v1045 = vadd.f32 0.0, %v1044
      %v1046 = vpop.f32.mrf.mxu0
      %v1047 = vadd.f32 0.0, %v1046
      %1048 = vdwg.mxu0
      %v1049 = vld [vmem:[#allocation2] sm:$0xff]
      %v1050 = vld [vmem:[#allocation2 + $0x8] sm:$0xff]
      %v1051 = vld [vmem:[#allocation2 + $0x10] sm:$0xff]
      %v1052 = vld [vmem:[#allocation2 + $0x18] sm:$0xff]
      %v1053 = vld [vmem:[#allocation2 + $0x20] sm:$0xff]
      %v1054 = vld [vmem:[#allocation2 + $0x28] sm:$0xff]
      %v1055 = vld [vmem:[#allocation2 + $0x30] sm:$0xff]
      %v1056 = vld [vmem:[#allocation2 + $0x38] sm:$0xff]
      %v1057 = vld [vmem:[#allocation2 + $0x40] sm:$0xff]
      %v1058 = vld [vmem:[#allocation2 + $0x48] sm:$0xff]
      %v1059 = vld [vmem:[#allocation2 + $0x50] sm:$0xff]
      %v1060 = vld [vmem:[#allocation2 + $0x58] sm:$0xff]
      %v1061 = vld [vmem:[#allocation2 + $0x60] sm:$0xff]
      %v1062 = vld [vmem:[#allocation2 + $0x68] sm:$0xff]
      %v1063 = vld [vmem:[#allocation2 + $0x70] sm:$0xff]
      %v1064 = vld [vmem:[#allocation2 + $0x78] sm:$0xff]
      %v1065 = vld [vmem:[#allocation2 + $0x80] sm:$0xff]
      %v1066 = vld [vmem:[#allocation2 + $0x88] sm:$0xff]
      %v1067 = vld [vmem:[#allocation2 + $0x90] sm:$0xff]
      %v1068 = vld [vmem:[#allocation2 + $0x98] sm:$0xff]
      %v1069 = vld [vmem:[#allocation2 + $0xa0] sm:$0xff]
      %v1070 = vld [vmem:[#allocation2 + $0xa8] sm:$0xff]
      %v1071 = vld [vmem:[#allocation2 + $0xb0] sm:$0xff]
      %v1072 = vld [vmem:[#allocation2 + $0xb8] sm:$0xff]
      %v1073 = vld [vmem:[#allocation2 + $0xc0] sm:$0xff]
      %v1074 = vld [vmem:[#allocation2 + $0xc8] sm:$0xff]
      %v1075 = vld [vmem:[#allocation2 + $0xd0] sm:$0xff]
      %v1076 = vld [vmem:[#allocation2 + $0xd8] sm:$0xff]
      %v1077 = vld [vmem:[#allocation2 + $0xe0] sm:$0xff]
      %v1078 = vld [vmem:[#allocation2 + $0xe8] sm:$0xff]
      %v1079 = vld [vmem:[#allocation2 + $0xf0] sm:$0xff]
      %v1080 = vld [vmem:[#allocation2 + $0xf8] sm:$0xff]
      %v1081 = vadd.f32 %v1049, %v970
      %v1082 = vadd.f32 %v1050, %v972
      %v1083 = vadd.f32 %v1051, %v975
      %v1084 = vadd.f32 %v1052, %v977
      %v1085 = vadd.f32 %v1053, %v980
      %v1086 = vadd.f32 %v1054, %v982
      %v1087 = vadd.f32 %v1055, %v985
      %v1088 = vadd.f32 %v1056, %v987
      %v1089 = vadd.f32 %v1057, %v990
      %v1090 = vadd.f32 %v1058, %v992
      %v1091 = vadd.f32 %v1059, %v995
      %v1092 = vadd.f32 %v1060, %v997
      %v1093 = vadd.f32 %v1061, %v1000
      %v1094 = vadd.f32 %v1062, %v1002
      %v1095 = vadd.f32 %v1063, %v1005
      %v1096 = vadd.f32 %v1064, %v1007
      %v1097 = vadd.f32 %v1065, %v1010
      %v1098 = vadd.f32 %v1066, %v1012
      %v1099 = vadd.f32 %v1067, %v1015
      %v1100 = vadd.f32 %v1068, %v1017
      %v1101 = vadd.f32 %v1069, %v1020
      %v1102 = vadd.f32 %v1070, %v1022
      %v1103 = vadd.f32 %v1071, %v1025
      %v1104 = vadd.f32 %v1072, %v1027
      %v1105 = vadd.f32 %v1073, %v1030
      %v1106 = vadd.f32 %v1074, %v1032
      %v1107 = vadd.f32 %v1075, %v1035
      %v1108 = vadd.f32 %v1076, %v1037
      %v1109 = vadd.f32 %v1077, %v1040
      %v1110 = vadd.f32 %v1078, %v1042
      %v1111 = vadd.f32 %v1079, %v1045
      %v1112 = vadd.f32 %v1080, %v1047
      %1113 = vst [vmem:[#allocation2] sm:$0xff] %v1081
      %1114 = vst [vmem:[#allocation2 + $0x8] sm:$0xff] %v1082
      %1115 = vst [vmem:[#allocation2 + $0x10] sm:$0xff] %v1083
      %1116 = vst [vmem:[#allocation2 + $0x18] sm:$0xff] %v1084
      %1117 = vst [vmem:[#allocation2 + $0x20] sm:$0xff] %v1085
      %1118 = vst [vmem:[#allocation2 + $0x28] sm:$0xff] %v1086
      %1119 = vst [vmem:[#allocation2 + $0x30] sm:$0xff] %v1087
      %1120 = vst [vmem:[#allocation2 + $0x38] sm:$0xff] %v1088
      %1121 = vst [vmem:[#allocation2 + $0x40] sm:$0xff] %v1089
      %1122 = vst [vmem:[#allocation2 + $0x48] sm:$0xff] %v1090
      %1123 = vst [vmem:[#allocation2 + $0x50] sm:$0xff] %v1091
      %1124 = vst [vmem:[#allocation2 + $0x58] sm:$0xff] %v1092
      %1125 = vst [vmem:[#allocation2 + $0x60] sm:$0xff] %v1093
      %1126 = vst [vmem:[#allocation2 + $0x68] sm:$0xff] %v1094
      %1127 = vst [vmem:[#allocation2 + $0x70] sm:$0xff] %v1095
      %1128 = vst [vmem:[#allocation2 + $0x78] sm:$0xff] %v1096
      %1129 = vst [vmem:[#allocation2 + $0x80] sm:$0xff] %v1097
      %1130 = vst [vmem:[#allocation2 + $0x88] sm:$0xff] %v1098
      %1131 = vst [vmem:[#allocation2 + $0x90] sm:$0xff] %v1099
      %1132 = vst [vmem:[#allocation2 + $0x98] sm:$0xff] %v1100
      %1133 = vst [vmem:[#allocation2 + $0xa0] sm:$0xff] %v1101
      %1134 = vst [vmem:[#allocation2 + $0xa8] sm:$0xff] %v1102
      %1135 = vst [vmem:[#allocation2 + $0xb0] sm:$0xff] %v1103
      %1136 = vst [vmem:[#allocation2 + $0xb8] sm:$0xff] %v1104
      %1137 = vst [vmem:[#allocation2 + $0xc0] sm:$0xff] %v1105
      %1138 = vst [vmem:[#allocation2 + $0xc8] sm:$0xff] %v1106
      %1139 = vst [vmem:[#allocation2 + $0xd0] sm:$0xff] %v1107
      %1140 = vst [vmem:[#allocation2 + $0xd8] sm:$0xff] %v1108
      %1141 = vst [vmem:[#allocation2 + $0xe0] sm:$0xff] %v1109
      %1142 = vst [vmem:[#allocation2 + $0xe8] sm:$0xff] %v1110
      %1143 = vst [vmem:[#allocation2 + $0xf0] sm:$0xff] %v1111
      %1144 = vst [vmem:[#allocation2 + $0xf8] sm:$0xff] %v1112
      %v1147 = vunpack.c.l.b16 %v248
      %v1148 = vunpack.c.l.b16 %v249
      %v1149 = vpack.c.b16 %v1148, %v1147
      %v1151 = vunpack.c.l.b16 %v250
      %v1152 = vpack.c.b16 %v1151, %v1151
      %v1154 = vshrl.u32 %v1149, 16
      %v1156 = vshll.u32 %v1149, 16
      %v1158 = vrot.slane %v1156, 1
      %v1159 = vor.u32 %v1154, %v1158
      %v1161 = vshll.u32 %v1152, 16
      %v1163 = vrot.slane %v1161, 1
      %v1164 = vsel %vm379, %v1159, %v1163
      %1165 = vrot.lane.b32.xlu0 %v1164, 4
      %v1166 = vpop.permute.xlu0 %1165
      %v1167 = vrot.slane %v1149, 1
      %v1168 = vrot.slane %v1152, 1
      %v1169 = vsel %vm604, %v1167, %v1168
      %1170 = vrot.lane.b32.xlu0 %v1169, 8
      %v1171 = vpop.permute.xlu0 %1170
      %v1173 = vsel %vm685, %v1149, %v1166
      %v1175 = vsel %vm718, %v1173, %v1171
      %s1176 = scalar_lea.vmem %s1, 16
      %v1177 = vld [vmem:[%s1176] sm:$0xf]
      %v1178 = vld [vmem:[%s1176 + $0x4] sm:$0x3]
      %v1181 = vunpack.c.l.b16 %v1177
      %v1182 = vunpack.c.l.b16 %v1178
      %v1183 = vpack.c.b16 %v1182, %v1181
      %v1184 = vsel %vm758, %v1175, 0
      %v1187 = vsel %vm791, %v1183, 0
      %1189 = vmatpush.bf16.msra.mxu0 0
      %1190 = vmatpush.bf16.msra.mxu0 0
      %1191 = vmatpush.bf16.msra.mxu0 0
      %1192 = vmatpush.bf16.msra.mxu0 0
      %1193 = vmatpush.bf16.msra.mxu0 0
      %1194 = vmatpush.bf16.msra.mxu0 0
      %1195 = vmatpush.bf16.msra.mxu0 0
      %1196 = vmatpush.bf16.msra.mxu0 %v1187
      %1197 = vmatmul.bf16.gmra.mxu0 %v763
      %v1198 = vpop.f32.mrf.mxu0
      %v1199 = vadd.f32 0.0, %v1198
      %v1200 = vpop.f32.mrf.mxu0
      %v1201 = vadd.f32 0.0, %v1200
      %1202 = vmatmul.bf16.gmra.mxu0 %v765
      %v1203 = vpop.f32.mrf.mxu0
      %v1204 = vadd.f32 0.0, %v1203
      %v1205 = vpop.f32.mrf.mxu0
      %v1206 = vadd.f32 0.0, %v1205
      %1207 = vmatmul.bf16.gmra.mxu0 %v767
      %v1208 = vpop.f32.mrf.mxu0
      %v1209 = vadd.f32 0.0, %v1208
      %v1210 = vpop.f32.mrf.mxu0
      %v1211 = vadd.f32 0.0, %v1210
      %1212 = vmatmul.bf16.gmra.mxu0 %v769
      %v1213 = vpop.f32.mrf.mxu0
      %v1214 = vadd.f32 0.0, %v1213
      %v1215 = vpop.f32.mrf.mxu0
      %v1216 = vadd.f32 0.0, %v1215
      %1217 = vmatmul.bf16.gmra.mxu0 %v771
      %v1218 = vpop.f32.mrf.mxu0
      %v1219 = vadd.f32 0.0, %v1218
      %v1220 = vpop.f32.mrf.mxu0
      %v1221 = vadd.f32 0.0, %v1220
      %1222 = vmatmul.bf16.gmra.mxu0 %v773
      %v1223 = vpop.f32.mrf.mxu0
      %v1224 = vadd.f32 0.0, %v1223
      %v1225 = vpop.f32.mrf.mxu0
      %v1226 = vadd.f32 0.0, %v1225
      %1227 = vmatmul.bf16.gmra.mxu0 %v775
      %v1228 = vpop.f32.mrf.mxu0
      %v1229 = vadd.f32 0.0, %v1228
      %v1230 = vpop.f32.mrf.mxu0
      %v1231 = vadd.f32 0.0, %v1230
      %1232 = vmatmul.bf16.gmra.mxu0 %v777
      %v1233 = vpop.f32.mrf.mxu0
      %v1234 = vadd.f32 0.0, %v1233
      %v1235 = vpop.f32.mrf.mxu0
      %v1236 = vadd.f32 0.0, %v1235
      %1237 = vmatmul.bf16.gmra.mxu0 %v779
      %v1238 = vpop.f32.mrf.mxu0
      %v1239 = vadd.f32 0.0, %v1238
      %v1240 = vpop.f32.mrf.mxu0
      %v1241 = vadd.f32 0.0, %v1240
      %1242 = vmatmul.bf16.gmra.mxu0 %v781
      %v1243 = vpop.f32.mrf.mxu0
      %v1244 = vadd.f32 0.0, %v1243
      %v1245 = vpop.f32.mrf.mxu0
      %v1246 = vadd.f32 0.0, %v1245
      %1247 = vmatmul.bf16.gmra.mxu0 %v783
      %v1248 = vpop.f32.mrf.mxu0
      %v1249 = vadd.f32 0.0, %v1248
      %v1250 = vpop.f32.mrf.mxu0
      %v1251 = vadd.f32 0.0, %v1250
      %1252 = vmatmul.bf16.gmra.mxu0 %v785
      %v1253 = vpop.f32.mrf.mxu0
      %v1254 = vadd.f32 0.0, %v1253
      %v1255 = vpop.f32.mrf.mxu0
      %v1256 = vadd.f32 0.0, %v1255
      %1257 = vmatmul.bf16.gmra.mxu0 %v787
      %v1258 = vpop.f32.mrf.mxu0
      %v1259 = vadd.f32 0.0, %v1258
      %v1260 = vpop.f32.mrf.mxu0
      %v1261 = vadd.f32 0.0, %v1260
      %1262 = vmatmul.bf16.gmra.mxu0 %v789
      %v1263 = vpop.f32.mrf.mxu0
      %v1264 = vadd.f32 0.0, %v1263
      %v1265 = vpop.f32.mrf.mxu0
      %v1266 = vadd.f32 0.0, %v1265
      %1267 = vmatmul.bf16.gmra.mxu0 %v955
      %v1268 = vpop.f32.mrf.mxu0
      %v1269 = vadd.f32 0.0, %v1268
      %v1270 = vpop.f32.mrf.mxu0
      %v1271 = vadd.f32 0.0, %v1270
      %1272 = vmatmul.bf16.gmra.mxu0 %v1184
      %v1273 = vpop.f32.mrf.mxu0
      %v1274 = vadd.f32 0.0, %v1273
      %v1275 = vpop.f32.mrf.mxu0
      %v1276 = vadd.f32 0.0, %v1275
      %1277 = vdwg.mxu0
      %v1278 = vld [vmem:[#allocation2] sm:$0xff]
      %v1279 = vld [vmem:[#allocation2 + $0x8] sm:$0xff]
      %v1280 = vld [vmem:[#allocation2 + $0x10] sm:$0xff]
      %v1281 = vld [vmem:[#allocation2 + $0x18] sm:$0xff]
      %v1282 = vld [vmem:[#allocation2 + $0x20] sm:$0xff]
      %v1283 = vld [vmem:[#allocation2 + $0x28] sm:$0xff]
      %v1284 = vld [vmem:[#allocation2 + $0x30] sm:$0xff]
      %v1285 = vld [vmem:[#allocation2 + $0x38] sm:$0xff]
      %v1286 = vld [vmem:[#allocation2 + $0x40] sm:$0xff]
      %v1287 = vld [vmem:[#allocation2 + $0x48] sm:$0xff]
      %v1288 = vld [vmem:[#allocation2 + $0x50] sm:$0xff]
      %v1289 = vld [vmem:[#allocation2 + $0x58] sm:$0xff]
      %v1290 = vld [vmem:[#allocation2 + $0x60] sm:$0xff]
      %v1291 = vld [vmem:[#allocation2 + $0x68] sm:$0xff]
      %v1292 = vld [vmem:[#allocation2 + $0x70] sm:$0xff]
      %v1293 = vld [vmem:[#allocation2 + $0x78] sm:$0xff]
      %v1294 = vld [vmem:[#allocation2 + $0x80] sm:$0xff]
      %v1295 = vld [vmem:[#allocation2 + $0x88] sm:$0xff]
      %v1296 = vld [vmem:[#allocation2 + $0x90] sm:$0xff]
      %v1297 = vld [vmem:[#allocation2 + $0x98] sm:$0xff]
      %v1298 = vld [vmem:[#allocation2 + $0xa0] sm:$0xff]
      %v1299 = vld [vmem:[#allocation2 + $0xa8] sm:$0xff]
      %v1300 = vld [vmem:[#allocation2 + $0xb0] sm:$0xff]
      %v1301 = vld [vmem:[#allocation2 + $0xb8] sm:$0xff]
      %v1302 = vld [vmem:[#allocation2 + $0xc0] sm:$0xff]
      %v1303 = vld [vmem:[#allocation2 + $0xc8] sm:$0xff]
      %v1304 = vld [vmem:[#allocation2 + $0xd0] sm:$0xff]
      %v1305 = vld [vmem:[#allocation2 + $0xd8] sm:$0xff]
      %v1306 = vld [vmem:[#allocation2 + $0xe0] sm:$0xff]
      %v1307 = vld [vmem:[#allocation2 + $0xe8] sm:$0xff]
      %v1308 = vld [vmem:[#allocation2 + $0xf0] sm:$0xff]
      %v1309 = vld [vmem:[#allocation2 + $0xf8] sm:$0xff]
      %v1310 = vadd.f32 %v1278, %v1199
      %v1311 = vadd.f32 %v1279, %v1201
      %v1312 = vadd.f32 %v1280, %v1204
      %v1313 = vadd.f32 %v1281, %v1206
      %v1314 = vadd.f32 %v1282, %v1209
      %v1315 = vadd.f32 %v1283, %v1211
      %v1316 = vadd.f32 %v1284, %v1214
      %v1317 = vadd.f32 %v1285, %v1216
      %v1318 = vadd.f32 %v1286, %v1219
      %v1319 = vadd.f32 %v1287, %v1221
      %v1320 = vadd.f32 %v1288, %v1224
      %v1321 = vadd.f32 %v1289, %v1226
      %v1322 = vadd.f32 %v1290, %v1229
      %v1323 = vadd.f32 %v1291, %v1231
      %v1324 = vadd.f32 %v1292, %v1234
      %v1325 = vadd.f32 %v1293, %v1236
      %v1326 = vadd.f32 %v1294, %v1239
      %v1327 = vadd.f32 %v1295, %v1241
      %v1328 = vadd.f32 %v1296, %v1244
      %v1329 = vadd.f32 %v1297, %v1246
      %v1330 = vadd.f32 %v1298, %v1249
      %v1331 = vadd.f32 %v1299, %v1251
      %v1332 = vadd.f32 %v1300, %v1254
      %v1333 = vadd.f32 %v1301, %v1256
      %v1334 = vadd.f32 %v1302, %v1259
      %v1335 = vadd.f32 %v1303, %v1261
      %v1336 = vadd.f32 %v1304, %v1264
      %v1337 = vadd.f32 %v1305, %v1266
      %v1338 = vadd.f32 %v1306, %v1269
      %v1339 = vadd.f32 %v1307, %v1271
      %v1340 = vadd.f32 %v1308, %v1274
      %v1341 = vadd.f32 %v1309, %v1276
      %1342 = vst [vmem:[#allocation2] sm:$0xff] %v1310
      %1343 = vst [vmem:[#allocation2 + $0x8] sm:$0xff] %v1311
      %1344 = vst [vmem:[#allocation2 + $0x10] sm:$0xff] %v1312
      %1345 = vst [vmem:[#allocation2 + $0x18] sm:$0xff] %v1313
      %1346 = vst [vmem:[#allocation2 + $0x20] sm:$0xff] %v1314
      %1347 = vst [vmem:[#allocation2 + $0x28] sm:$0xff] %v1315
      %1348 = vst [vmem:[#allocation2 + $0x30] sm:$0xff] %v1316
      %1349 = vst [vmem:[#allocation2 + $0x38] sm:$0xff] %v1317
      %1350 = vst [vmem:[#allocation2 + $0x40] sm:$0xff] %v1318
      %1351 = vst [vmem:[#allocation2 + $0x48] sm:$0xff] %v1319
      %1352 = vst [vmem:[#allocation2 + $0x50] sm:$0xff] %v1320
      %1353 = vst [vmem:[#allocation2 + $0x58] sm:$0xff] %v1321
      %1354 = vst [vmem:[#allocation2 + $0x60] sm:$0xff] %v1322
      %1355 = vst [vmem:[#allocation2 + $0x68] sm:$0xff] %v1323
      %1356 = vst [vmem:[#allocation2 + $0x70] sm:$0xff] %v1324
      %1357 = vst [vmem:[#allocation2 + $0x78] sm:$0xff] %v1325
      %1358 = vst [vmem:[#allocation2 + $0x80] sm:$0xff] %v1326
      %1359 = vst [vmem:[#allocation2 + $0x88] sm:$0xff] %v1327
      %1360 = vst [vmem:[#allocation2 + $0x90] sm:$0xff] %v1328
      %1361 = vst [vmem:[#allocation2 + $0x98] sm:$0xff] %v1329
      %1362 = vst [vmem:[#allocation2 + $0xa0] sm:$0xff] %v1330
      %1363 = vst [vmem:[#allocation2 + $0xa8] sm:$0xff] %v1331
      %1364 = vst [vmem:[#allocation2 + $0xb0] sm:$0xff] %v1332
      %1365 = vst [vmem:[#allocation2 + $0xb8] sm:$0xff] %v1333
      %1366 = vst [vmem:[#allocation2 + $0xc0] sm:$0xff] %v1334
      %1367 = vst [vmem:[#allocation2 + $0xc8] sm:$0xff] %v1335
      %1368 = vst [vmem:[#allocation2 + $0xd0] sm:$0xff] %v1336
      %1369 = vst [vmem:[#allocation2 + $0xd8] sm:$0xff] %v1337
      %1370 = vst [vmem:[#allocation2 + $0xe0] sm:$0xff] %v1338
      %1371 = vst [vmem:[#allocation2 + $0xe8] sm:$0xff] %v1339
      %1372 = vst [vmem:[#allocation2 + $0xf0] sm:$0xff] %v1340
      %1373 = vst [vmem:[#allocation2 + $0xf8] sm:$0xff] %v1341
      %v1374 = vld [vmem:[#allocation2] sm:$0xff]
      %v1375 = vld [vmem:[#allocation2 + $0x8] sm:$0xff]
      %v1376 = vld [vmem:[#allocation2 + $0x10] sm:$0xff]
      %v1377 = vld [vmem:[#allocation2 + $0x18] sm:$0xff]
      %v1378 = vld [vmem:[#allocation2 + $0x20] sm:$0xff]
      %v1379 = vld [vmem:[#allocation2 + $0x28] sm:$0xff]
      %v1380 = vld [vmem:[#allocation2 + $0x30] sm:$0xff]
      %v1381 = vld [vmem:[#allocation2 + $0x38] sm:$0xff]
      %v1382 = vld [vmem:[#allocation2 + $0x40] sm:$0xff]
      %v1383 = vld [vmem:[#allocation2 + $0x48] sm:$0xff]
      %v1384 = vld [vmem:[#allocation2 + $0x50] sm:$0xff]
      %v1385 = vld [vmem:[#allocation2 + $0x58] sm:$0xff]
      %v1386 = vld [vmem:[#allocation2 + $0x60] sm:$0xff]
      %v1387 = vld [vmem:[#allocation2 + $0x68] sm:$0xff]
      %v1388 = vld [vmem:[#allocation2 + $0x70] sm:$0xff]
      %v1389 = vld [vmem:[#allocation2 + $0x78] sm:$0xff]
      %v1390 = vld [vmem:[#allocation2 + $0x80] sm:$0xff]
      %v1391 = vld [vmem:[#allocation2 + $0x88] sm:$0xff]
      %v1392 = vld [vmem:[#allocation2 + $0x90] sm:$0xff]
      %v1393 = vld [vmem:[#allocation2 + $0x98] sm:$0xff]
      %v1394 = vld [vmem:[#allocation2 + $0xa0] sm:$0xff]
      %v1395 = vld [vmem:[#allocation2 + $0xa8] sm:$0xff]
      %v1396 = vld [vmem:[#allocation2 + $0xb0] sm:$0xff]
      %v1397 = vld [vmem:[#allocation2 + $0xb8] sm:$0xff]
      %v1398 = vld [vmem:[#allocation2 + $0xc0] sm:$0xff]
      %v1399 = vld [vmem:[#allocation2 + $0xc8] sm:$0xff]
      %v1400 = vld [vmem:[#allocation2 + $0xd0] sm:$0xff]
      %v1401 = vld [vmem:[#allocation2 + $0xd8] sm:$0xff]
      %v1402 = vld [vmem:[#allocation2 + $0xe0] sm:$0xff]
      %v1403 = vld [vmem:[#allocation2 + $0xe8] sm:$0xff]
      %v1404 = vld [vmem:[#allocation2 + $0xf0] sm:$0xff]
      %v1405 = vld [vmem:[#allocation2 + $0xf8] sm:$0xff]
      %v1406 = vld [vmem:[%s2] sm:$0x1]
      %v1408 = vperm.slane %v1406, 0
      %v1410 = vadd.f32 %v1374, %v1408
      %v1411 = vadd.f32 %v1375, %v1408
      %v1412 = vadd.f32 %v1376, %v1408
      %v1413 = vadd.f32 %v1377, %v1408
      %v1414 = vadd.f32 %v1378, %v1408
      %v1415 = vadd.f32 %v1379, %v1408
      %v1416 = vadd.f32 %v1380, %v1408
      %v1417 = vadd.f32 %v1381, %v1408
      %v1418 = vadd.f32 %v1382, %v1408
      %v1419 = vadd.f32 %v1383, %v1408
      %v1420 = vadd.f32 %v1384, %v1408
      %v1421 = vadd.f32 %v1385, %v1408
      %v1422 = vadd.f32 %v1386, %v1408
      %v1423 = vadd.f32 %v1387, %v1408
      %v1424 = vadd.f32 %v1388, %v1408
      %v1425 = vadd.f32 %v1389, %v1408
      %v1426 = vadd.f32 %v1390, %v1408
      %v1427 = vadd.f32 %v1391, %v1408
      %v1428 = vadd.f32 %v1392, %v1408
      %v1429 = vadd.f32 %v1393, %v1408
      %v1430 = vadd.f32 %v1394, %v1408
      %v1431 = vadd.f32 %v1395, %v1408
      %v1432 = vadd.f32 %v1396, %v1408
      %v1433 = vadd.f32 %v1397, %v1408
      %v1434 = vadd.f32 %v1398, %v1408
      %v1435 = vadd.f32 %v1399, %v1408
      %v1436 = vadd.f32 %v1400, %v1408
      %v1437 = vadd.f32 %v1401, %v1408
      %v1438 = vadd.f32 %v1402, %v1408
      %v1439 = vadd.f32 %v1403, %v1408
      %v1440 = vadd.f32 %v1404, %v1408
      %v1441 = vadd.f32 %v1405, %v1408
      %v1442 = vmul.f32 %v1410, 0.5
      %v1443 = vmul.f32 %v1411, 0.5
      %v1444 = vmul.f32 %v1412, 0.5
      %v1445 = vmul.f32 %v1413, 0.5
      %v1446 = vmul.f32 %v1414, 0.5
      %v1447 = vmul.f32 %v1415, 0.5
      %v1448 = vmul.f32 %v1416, 0.5
      %v1449 = vmul.f32 %v1417, 0.5
      %v1450 = vmul.f32 %v1418, 0.5
      %v1451 = vmul.f32 %v1419, 0.5
      %v1452 = vmul.f32 %v1420, 0.5
      %v1453 = vmul.f32 %v1421, 0.5
      %v1454 = vmul.f32 %v1422, 0.5
      %v1455 = vmul.f32 %v1423, 0.5
      %v1456 = vmul.f32 %v1424, 0.5
      %v1457 = vmul.f32 %v1425, 0.5
      %v1458 = vmul.f32 %v1426, 0.5
      %v1459 = vmul.f32 %v1427, 0.5
      %v1460 = vmul.f32 %v1428, 0.5
      %v1461 = vmul.f32 %v1429, 0.5
      %v1462 = vmul.f32 %v1430, 0.5
      %v1463 = vmul.f32 %v1431, 0.5
      %v1464 = vmul.f32 %v1432, 0.5
      %v1465 = vmul.f32 %v1433, 0.5
      %v1466 = vmul.f32 %v1434, 0.5
      %v1467 = vmul.f32 %v1435, 0.5
      %v1468 = vmul.f32 %v1436, 0.5
      %v1469 = vmul.f32 %v1437, 0.5
      %v1470 = vmul.f32 %v1438, 0.5
      %v1471 = vmul.f32 %v1439, 0.5
      %v1472 = vmul.f32 %v1440, 0.5
      %v1473 = vmul.f32 %v1441, 0.5
      %v1474 = vtanh.pop %v1442
      %v1475 = vtanh.pop %v1443
      %v1476 = vtanh.pop %v1444
      %v1477 = vtanh.pop %v1445
      %v1478 = vtanh.pop %v1446
      %v1479 = vtanh.pop %v1447
      %v1480 = vtanh.pop %v1448
      %v1481 = vtanh.pop %v1449
      %v1482 = vtanh.pop %v1450
      %v1483 = vtanh.pop %v1451
      %v1484 = vtanh.pop %v1452
      %v1485 = vtanh.pop %v1453
      %v1486 = vtanh.pop %v1454
      %v1487 = vtanh.pop %v1455
      %v1488 = vtanh.pop %v1456
      %v1489 = vtanh.pop %v1457
      %v1490 = vtanh.pop %v1458
      %v1491 = vtanh.pop %v1459
      %v1492 = vtanh.pop %v1460
      %v1493 = vtanh.pop %v1461
      %v1494 = vtanh.pop %v1462
      %v1495 = vtanh.pop %v1463
      %v1496 = vtanh.pop %v1464
      %v1497 = vtanh.pop %v1465
      %v1498 = vtanh.pop %v1466
      %v1499 = vtanh.pop %v1467
      %v1500 = vtanh.pop %v1468
      %v1501 = vtanh.pop %v1469
      %v1502 = vtanh.pop %v1470
      %v1503 = vtanh.pop %v1471
      %v1504 = vtanh.pop %v1472
      %v1505 = vtanh.pop %v1473
      %v1506 = vadd.f32 %v1474, 1.0
      %v1507 = vadd.f32 %v1475, 1.0
      %v1508 = vadd.f32 %v1476, 1.0
      %v1509 = vadd.f32 %v1477, 1.0
      %v1510 = vadd.f32 %v1478, 1.0
      %v1511 = vadd.f32 %v1479, 1.0
      %v1512 = vadd.f32 %v1480, 1.0
      %v1513 = vadd.f32 %v1481, 1.0
      %v1514 = vadd.f32 %v1482, 1.0
      %v1515 = vadd.f32 %v1483, 1.0
      %v1516 = vadd.f32 %v1484, 1.0
      %v1517 = vadd.f32 %v1485, 1.0
      %v1518 = vadd.f32 %v1486, 1.0
      %v1519 = vadd.f32 %v1487, 1.0
      %v1520 = vadd.f32 %v1488, 1.0
      %v1521 = vadd.f32 %v1489, 1.0
      %v1522 = vadd.f32 %v1490, 1.0
      %v1523 = vadd.f32 %v1491, 1.0
      %v1524 = vadd.f32 %v1492, 1.0
      %v1525 = vadd.f32 %v1493, 1.0
      %v1526 = vadd.f32 %v1494, 1.0
      %v1527 = vadd.f32 %v1495, 1.0
      %v1528 = vadd.f32 %v1496, 1.0
      %v1529 = vadd.f32 %v1497, 1.0
      %v1530 = vadd.f32 %v1498, 1.0
      %v1531 = vadd.f32 %v1499, 1.0
      %v1532 = vadd.f32 %v1500, 1.0
      %v1533 = vadd.f32 %v1501, 1.0
      %v1534 = vadd.f32 %v1502, 1.0
      %v1535 = vadd.f32 %v1503, 1.0
      %v1536 = vadd.f32 %v1504, 1.0
      %v1537 = vadd.f32 %v1505, 1.0
      %v1538 = vmul.f32 %v1506, 0.5
      %v1539 = vmul.f32 %v1507, 0.5
      %v1540 = vmul.f32 %v1508, 0.5
      %v1541 = vmul.f32 %v1509, 0.5
      %v1542 = vmul.f32 %v1510, 0.5
      %v1543 = vmul.f32 %v1511, 0.5
      %v1544 = vmul.f32 %v1512, 0.5
      %v1545 = vmul.f32 %v1513, 0.5
      %v1546 = vmul.f32 %v1514, 0.5
      %v1547 = vmul.f32 %v1515, 0.5
      %v1548 = vmul.f32 %v1516, 0.5
      %v1549 = vmul.f32 %v1517, 0.5
      %v1550 = vmul.f32 %v1518, 0.5
      %v1551 = vmul.f32 %v1519, 0.5
      %v1552 = vmul.f32 %v1520, 0.5
      %v1553 = vmul.f32 %v1521, 0.5
      %v1554 = vmul.f32 %v1522, 0.5
      %v1555 = vmul.f32 %v1523, 0.5
      %v1556 = vmul.f32 %v1524, 0.5
      %v1557 = vmul.f32 %v1525, 0.5
      %v1558 = vmul.f32 %v1526, 0.5
      %v1559 = vmul.f32 %v1527, 0.5
      %v1560 = vmul.f32 %v1528, 0.5
      %v1561 = vmul.f32 %v1529, 0.5
      %v1562 = vmul.f32 %v1530, 0.5
      %v1563 = vmul.f32 %v1531, 0.5
      %v1564 = vmul.f32 %v1532, 0.5
      %v1565 = vmul.f32 %v1533, 0.5
      %v1566 = vmul.f32 %v1534, 0.5
      %v1567 = vmul.f32 %v1535, 0.5
      %v1568 = vmul.f32 %v1536, 0.5
      %v1569 = vmul.f32 %v1537, 0.5
      %v1570 = vmul.f32 %v1410, %v1538
      %v1571 = vmul.f32 %v1411, %v1539
      %v1572 = vmul.f32 %v1412, %v1540
      %v1573 = vmul.f32 %v1413, %v1541
      %v1574 = vmul.f32 %v1414, %v1542
      %v1575 = vmul.f32 %v1415, %v1543
      %v1576 = vmul.f32 %v1416, %v1544
      %v1577 = vmul.f32 %v1417, %v1545
      %v1578 = vmul.f32 %v1418, %v1546
      %v1579 = vmul.f32 %v1419, %v1547
      %v1580 = vmul.f32 %v1420, %v1548
      %v1581 = vmul.f32 %v1421, %v1549
      %v1582 = vmul.f32 %v1422, %v1550
      %v1583 = vmul.f32 %v1423, %v1551
      %v1584 = vmul.f32 %v1424, %v1552
      %v1585 = vmul.f32 %v1425, %v1553
      %v1586 = vmul.f32 %v1426, %v1554
      %v1587 = vmul.f32 %v1427, %v1555
      %v1588 = vmul.f32 %v1428, %v1556
      %v1589 = vmul.f32 %v1429, %v1557
      %v1590 = vmul.f32 %v1430, %v1558
      %v1591 = vmul.f32 %v1431, %v1559
      %v1592 = vmul.f32 %v1432, %v1560
      %v1593 = vmul.f32 %v1433, %v1561
      %v1594 = vmul.f32 %v1434, %v1562
      %v1595 = vmul.f32 %v1435, %v1563
      %v1596 = vmul.f32 %v1436, %v1564
      %v1597 = vmul.f32 %v1437, %v1565
      %v1598 = vmul.f32 %v1438, %v1566
      %v1599 = vmul.f32 %v1439, %v1567
      %v1600 = vmul.f32 %v1440, %v1568
      %v1601 = vmul.f32 %v1441, %v1569
      %1602 = vst [vmem:[%s194] sm:$0xff] %v1570
      %1603 = vst [vmem:[%s194 + $0x8] sm:$0xff] %v1571
      %1604 = vst [vmem:[%s194 + $0x10] sm:$0xff] %v1572
      %1605 = vst [vmem:[%s194 + $0x18] sm:$0xff] %v1573
      %1606 = vst [vmem:[%s194 + $0x20] sm:$0xff] %v1574
      %1607 = vst [vmem:[%s194 + $0x28] sm:$0xff] %v1575
      %1608 = vst [vmem:[%s194 + $0x30] sm:$0xff] %v1576
      %1609 = vst [vmem:[%s194 + $0x38] sm:$0xff] %v1577
      %1610 = vst [vmem:[%s194 + $0x40] sm:$0xff] %v1578
      %1611 = vst [vmem:[%s194 + $0x48] sm:$0xff] %v1579
      %1612 = vst [vmem:[%s194 + $0x50] sm:$0xff] %v1580
      %1613 = vst [vmem:[%s194 + $0x58] sm:$0xff] %v1581
      %1614 = vst [vmem:[%s194 + $0x60] sm:$0xff] %v1582
      %1615 = vst [vmem:[%s194 + $0x68] sm:$0xff] %v1583
      %1616 = vst [vmem:[%s194 + $0x70] sm:$0xff] %v1584
      %1617 = vst [vmem:[%s194 + $0x78] sm:$0xff] %v1585
      %1618 = vst [vmem:[%s194 + $0x80] sm:$0xff] %v1586
      %1619 = vst [vmem:[%s194 + $0x88] sm:$0xff] %v1587
      %1620 = vst [vmem:[%s194 + $0x90] sm:$0xff] %v1588
      %1621 = vst [vmem:[%s194 + $0x98] sm:$0xff] %v1589
      %1622 = vst [vmem:[%s194 + $0xa0] sm:$0xff] %v1590
      %1623 = vst [vmem:[%s194 + $0xa8] sm:$0xff] %v1591
      %1624 = vst [vmem:[%s194 + $0xb0] sm:$0xff] %v1592
      %1625 = vst [vmem:[%s194 + $0xb8] sm:$0xff] %v1593
      %1626 = vst [vmem:[%s194 + $0xc0] sm:$0xff] %v1594
      %1627 = vst [vmem:[%s194 + $0xc8] sm:$0xff] %v1595
      %1628 = vst [vmem:[%s194 + $0xd0] sm:$0xff] %v1596
      %1629 = vst [vmem:[%s194 + $0xd8] sm:$0xff] %v1597
      %1630 = vst [vmem:[%s194 + $0xe0] sm:$0xff] %v1598
      %1631 = vst [vmem:[%s194 + $0xe8] sm:$0xff] %v1599
      %1632 = vst [vmem:[%s194 + $0xf0] sm:$0xff] %v1600
      %1633 = vst [vmem:[%s194 + $0xf8] sm:$0xff] %v1601
      %s1634 = smul.u32 16, %s19
      %p1635 = scmp.lt.s32.totalorder %s18, 1
      %s1636 = scalar_select %p1635, %s18, 1
      %p1637 = scmp.lt.s32.totalorder %s1634, 15
      %s1638 = scalar_select %p1637, %s1634, 15
      %s1639 = smul.addr %s1638, 2
      %s1640 = smul.addr %s1636, 32
      %s1641 = sadd.s32 %s1639, %s1640
      %s1642 = smul.addr %s1641, 8
      %s1643 = scalar_lea.vmem %s3, %s1642
      // Predicated region
      $region33: #{conv_forward.1} parent=31 // pred_check
        %p1644 = pneg %p114
      $region34: #{conv_forward.1} parent=31 // pred_check_branch
        %1646 = sbr.rel (%p1644) target = $region36
      $region35: #{conv_forward.1} parent=31 // pred_region
        %s1647 = smul.u32 16, %s19
      $region36: #{conv_forward.1} parent=31 // pred_fallthru
        _
    $region32: #{conv_forward.1} parent=5 // pred_fallthru
      _
    %p1648 = scmp.le.s32.totalorder 2, %s9
    // Predicated region
    $region37: #{conv_forward.1} parent=5 // pred_check
      %p1649 = pneg %p1648
    $region38: #{conv_forward.1} parent=5 // pred_check_branch
      %1651 = sbr.rel (%p1649) target = $region40
    $region39: #{conv_forward.1} parent=5 // pred_region
      %s1652 = ssub.s32 %s9, 2
      // Predicated region
      $region41: #{conv_forward.1} parent=39 // pred_check
        %p1653 = pneg %p120
      $region42: #{conv_forward.1} parent=39 // pred_check_branch
        %1655 = sbr.rel (%p1653) target = $region44
      $region43: #{conv_forward.1} parent=39 // pred_region
        %s1656 = smul.u32 16, %s21
        %p1657 = scmp.lt.s32.totalorder %s20, 1
        %s1658 = scalar_select %p1657, %s20, 1
        %p1659 = scmp.lt.s32.totalorder %s1656, 15
        %s1660 = scalar_select %p1659, %s1656, 15
        %s1661 = smul.addr %s1660, 2
        %s1662 = smul.addr %s1658, 32
        %s1663 = sadd.s32 %s1661, %s1662
        %s1664 = smul.addr %s1663, 8
        %s1665 = scalar_lea.vmem %s3, %s1664
      $region44: #{conv_forward.1} parent=39 // pred_fallthru
        _
    $region40: #{conv_forward.1} parent=5 // pred_fallthru
      _
  $region6: #{conv_forward.1} parent=0 // loop_footer
    %s13 = sadd.s32 1, %s9
  $region7: #{conv_forward.1} parent=0 // loop_footer_branch
    %8 = sbr.rel target = $region3
  $region8: #{conv_forward.1} parent=0 // loop_exit
    _

</llo_original>
